<compile_context>
chip_gen: v6e
topology: v6e:2x2x1
jax: 0.10.0
libtpu: 0.0.40
codegen_flags: <defaults>
</compile_context>

<pallas_src>
import functools

import jax
import jax.numpy as jnp
from jax import lax
from jax.experimental import pallas as pl
from jax.experimental.pallas import tpu as pltpu

D_IN = 64          # LSTM input_size
H = 100            # LSTM hidden_size
HP = 128           # padded hidden size (lane aligned)
N_OUT = 40         # Linear out_features
B_BLK = 8          # batch rows per grid block (sublane aligned)
T_CHUNK_MAX = 64   # timesteps per grid step (streamed x chunk)
UNROLL = 8         # fori_loop unroll factor inside a chunk


def _sigmoid1(x):
    """sigmoid(x) = 0.5*tanh(0.5*x) + 0.5 : single EUP op instead of exp + reciprocal."""
    return 0.5 * jnp.tanh(0.5 * x) + 0.5


def lstm_chunk_kernel(x_ref, wih_ref, bias_ref, whh_ref, h_out_ref,
                      c_scr, gx_scr, *, t_chunk, tail_len, n_chunks, unroll):
    """One grid step == one (batch block, time chunk).

    x_ref    : (t_chunk, B_BLK, D_IN)  raw input chunk (time-major)
    wih_ref  : (D_IN, 4*HP)            input weight (padded, transposed), grid-invariant
    bias_ref : (1, 4*HP)               b_ih + b_hh (padded), grid-invariant
    whh_ref  : (HP, 4*HP)  bf16        recurrent weight (padded, transposed), grid-invariant
    h_out_ref: (B_BLK, HP)             resident output block, doubles as h carry
    c_scr    : (B_BLK, HP)             VMEM scratch, cell-state carry
    gx_scr   : (t_chunk*B_BLK, 4*HP)   VMEM scratch, per-chunk input projection
    """
    chunk = pl.program_id(1)

    @pl.when(chunk == 0)
    def _():
        h_out_ref[...] = jnp.zeros_like(h_out_ref)
        c_scr[...] = jnp.zeros_like(c_scr)

    # Chunk-start input projection (single matmul, off the per-step critical path).
    xb = x_ref[...].reshape(t_chunk * B_BLK, D_IN)
    gx_scr[...] = (jnp.dot(xb, wih_ref[...], preferred_element_type=jnp.float32)
                   + bias_ref[...])

    def step(i, carry):
        h, c = carry
        row0 = pl.multiple_of(i * B_BLK, B_BLK)
        gx = gx_scr[pl.ds(row0, B_BLK), :]
        # Only the recurrent projection sits on the serialized per-step path.
        gates = gx + jnp.dot(h.astype(jnp.bfloat16), whh_ref[...],
                             preferred_element_type=jnp.float32)
        # gate layout: [i | f | g | o], each HP lanes wide
        i_g = _sigmoid1(gates[:, 0 * HP:1 * HP])
        f_g = _sigmoid1(gates[:, 1 * HP:2 * HP])
        g_g = jnp.tanh(gates[:, 2 * HP:3 * HP])
        o_g = _sigmoid1(gates[:, 3 * HP:4 * HP])
        c_new = f_g * c + i_g * g_g
        h_new = o_g * jnp.tanh(c_new)
        return (h_new, c_new)

    carry0 = (h_out_ref[...], c_scr[...])

    if tail_len == t_chunk:
        # T divides into whole chunks: one unmasked unrolled loop, nothing else.
        h, c = lax.fori_loop(0, t_chunk, step, carry0, unroll=min(unroll, t_chunk))
        h_out_ref[...] = h
        c_scr[...] = c
    else:
        # Full chunks: unmasked.  Tail chunk: its own statically-sized unrolled loop.
        @pl.when(chunk < n_chunks - 1)
        def _():
            h, c = lax.fori_loop(0, t_chunk, step, carry0, unroll=min(unroll, t_chunk))
            h_out_ref[...] = h
            c_scr[...] = c

        @pl.when(chunk == n_chunks - 1)
        def _():
            h, c = lax.fori_loop(0, tail_len, step, carry0, unroll=min(unroll, tail_len))
            h_out_ref[...] = h
            c_scr[...] = c


def model_forward(x, params):
    """x: (B, T, D_IN) float32.  Returns (B, N_OUT) float32 (== PyTorch Model.forward)."""
    B, T, D = x.shape
    assert D == D_IN

    w_ih, w_hh, b_ih, b_hh, w_f, b_f = params  # PyTorch-shaped parameters

    # Pad hidden dim 100 -> 128 per gate and pre-transpose for x @ W style matmuls.
    # Padded columns / bias entries MUST stay exactly zero (keeps padded h/c lanes at 0).
    wih_p = jnp.zeros((4 * HP, D_IN), jnp.float32)
    whh_p = jnp.zeros((4 * HP, HP), jnp.float32)
    b_p = jnp.zeros((4 * HP,), jnp.float32)
    for k in range(4):
        wih_p = wih_p.at[k * HP:k * HP + H, :].set(w_ih[k * H:(k + 1) * H, :])
        whh_p = whh_p.at[k * HP:k * HP + H, :H].set(w_hh[k * H:(k + 1) * H, :])
        b_p = b_p.at[k * HP:k * HP + H].set(b_ih[k * H:(k + 1) * H] + b_hh[k * H:(k + 1) * H])

    wih_t = wih_p.T                                   # (D_IN, 4*HP)  f32, grid-invariant
    whh_t = whh_p.T.astype(jnp.bfloat16)              # (HP,   4*HP)  bf16, grid-invariant
    bias = b_p.reshape(1, 4 * HP)                     # (1,    4*HP)

    # Pad batch to B_BLK sublane blocks; pad time up to whole chunks.
    Bp = max(B_BLK, ((B + B_BLK - 1) // B_BLK) * B_BLK)
    n_b = Bp // B_BLK
    t_chunk = min(T, T_CHUNK_MAX)
    n_chunks = pl.cdiv(T, t_chunk)
    Tp = n_chunks * t_chunk
    tail_len = T - (n_chunks - 1) * t_chunk           # static tail length (== t_chunk if exact)

    # Time-major padded input (only the 64-wide tensor is transposed, not 512-wide gates).
    x_p = jnp.zeros((Tp, Bp, D_IN), jnp.float32).at[:T, :B, :].set(
        jnp.transpose(x, (1, 0, 2)))

    kernel = functools.partial(lstm_chunk_kernel, t_chunk=t_chunk, tail_len=tail_len,
                               n_chunks=n_chunks, unroll=UNROLL)

    h_last = pl.pallas_call(
        kernel,
        out_shape=jax.ShapeDtypeStruct((Bp, HP), jnp.float32),
        grid_spec=pltpu.PrefetchScalarGridSpec(
            num_scalar_prefetch=0,
            grid=(n_b, n_chunks),                                          # (batch, time)
            in_specs=[
                pl.BlockSpec((t_chunk, B_BLK, D_IN), lambda b, c: (c, b, 0)),  # x chunk
                pl.BlockSpec((D_IN, 4 * HP), lambda b, c: (0, 0)),             # W_ih^T
                pl.BlockSpec((1, 4 * HP), lambda b, c: (0, 0)),                # bias
                pl.BlockSpec((HP, 4 * HP), lambda b, c: (0, 0)),               # W_hh^T (bf16)
            ],
            out_specs=pl.BlockSpec((B_BLK, HP), lambda b, c: (b, 0)),          # h (resident)
            scratch_shapes=[
                pltpu.VMEM((B_BLK, HP), jnp.float32),                  # c carry
                pltpu.VMEM((t_chunk * B_BLK, 4 * HP), jnp.float32),    # per-chunk gates_x
            ],
        ),
        compiler_params=pltpu.CompilerParams(
            # batch blocks are independent (megacore on v7x); time is a recurrence.
            dimension_semantics=("parallel", "arbitrary"),
        ),
    )(x_p, wih_t, bias, whh_t)

    # Final Linear done once in plain XLA on the last hidden state.
    return h_last[:B, :H] @ w_f.T + b_f


def reference_forward(x, params):
    """Pure-JAX reference matching torch.nn.LSTM + Linear semantics."""
    w_ih, w_hh, b_ih, b_hh, w_f, b_f = params

    def step(carry, x_t):
        h, c = carry
        gates = x_t @ w_ih.T + b_ih + h @ w_hh.T + b_hh
        i = jax.nn.sigmoid(gates[:, 0 * H:1 * H])
        f = jax.nn.sigmoid(gates[:, 1 * H:2 * H])
        g = jnp.tanh(gates[:, 2 * H:3 * H])
        o = jax.nn.sigmoid(gates[:, 3 * H:4 * H])
        c = f * c + i * g
        h = o * jnp.tanh(c)
        return (h, c), None

    B = x.shape[0]
    h0 = jnp.zeros((B, H), jnp.float32)
    c0 = jnp.zeros((B, H), jnp.float32)
    (h_last, _), _ = lax.scan(step, (h0, c0), jnp.transpose(x, (1, 0, 2)))
    return h_last @ w_f.T + b_f


def init_params(key):
    """Deterministic parameter init with PyTorch shapes (uniform +/- 1/sqrt(H))."""
    ks = jax.random.split(key, 6)
    bound = 1.0 / jnp.sqrt(jnp.float32(H))
    u = lambda k, shape: jax.random.uniform(k, shape, jnp.float32, -bound, bound)
    w_ih = u(ks[0], (4 * H, D_IN))   # weight_ih_l0
    w_hh = u(ks[1], (4 * H, H))      # weight_hh_l0
    b_ih = u(ks[2], (4 * H,))        # bias_ih_l0
    b_hh = u(ks[3], (4 * H,))        # bias_hh_l0
    w_f = u(ks[4], (N_OUT, H))       # Linear weight
    b_f = u(ks[5], (N_OUT,))         # Linear bias
    return (w_ih, w_hh, b_ih, b_hh, w_f, b_f)


if __name__ == "__main__":
    key = jax.random.PRNGKey(0)
    k_x, k_p = jax.random.split(key)

    B, T = 2, 8
    x = jax.random.normal(k_x, (B, T, D_IN), jnp.float32)
    params = init_params(k_p)

    fwd = jax.jit(model_forward)
    out = jax.block_until_ready(fwd(x, params))
    ref = jax.block_until_ready(reference_forward(x, params))

    assert out.shape == (B, N_OUT), out.shape
    max_err = float(jnp.max(jnp.abs(out - ref)))
    assert max_err < 5e-3, f"max abs err {max_err}"
    print("KERNEL_OK")
</pallas_src>

<mosaic_0001>
module attributes {stable_mosaic.version = 11 : i64} {
  func.func @lstm_chunk_kernel(%arg0: i32, %arg1: i32, %arg2: memref<8x8x64xf32, #tpu.memory_space<vmem>>, %arg3: memref<64x512xf32, #tpu.memory_space<vmem>>, %arg4: memref<1x512xf32, #tpu.memory_space<vmem>>, %arg5: memref<128x512xbf16, #tpu.memory_space<vmem>>, %arg6: memref<8x128xf32, #tpu.memory_space<vmem>>, %arg7: memref<8x128xf32, #tpu.memory_space<vmem>>, %arg8: memref<64x512xf32, #tpu.memory_space<vmem>>) attributes {dimension_semantics = [#tpu.dimension_semantics<parallel>, #tpu.dimension_semantics<arbitrary>], iteration_bounds = array<i64: 1, 1>, scalar_prefetch = 0 : i64, scratch_operands = 2 : i64, tpu.core_type = #tpu.core_type<tc>, window_params = [{transform_indices = @transform_0, window_bounds = array<i64: 8, 8, 64>}, {pipeline_mode = #tpu.pipeline_mode<synchronous>, transform_indices = @transform_1, window_bounds = array<i64: 64, 512>}, {pipeline_mode = #tpu.pipeline_mode<synchronous>, transform_indices = @transform_2, window_bounds = array<i64: 1, 512>}, {pipeline_mode = #tpu.pipeline_mode<synchronous>, transform_indices = @transform_3, window_bounds = array<i64: 128, 512>}, {transform_indices = @transform_4, window_bounds = array<i64: 8, 128>}]} {
    %c0_i32 = arith.constant 0 : i32
    %0 = arith.cmpi eq, %arg1, %c0_i32 : i32
    %1 = arith.extui %0 : i1 to i32
    %c0_i32_0 = arith.constant 0 : i32
    %2 = arith.cmpi ne, %1, %c0_i32_0 : i32
    scf.if %2 {
      %cst_130 = arith.constant 0.000000e+00 : f32
      %327 = vector.broadcast %cst_130 : f32 to vector<8x128xf32>
      %c0_131 = arith.constant 0 : index
      %c0_132 = arith.constant 0 : index
      %328 = vector.load %arg6[%c0_131, %c0_132] : memref<8x128xf32, #tpu.memory_space<vmem>>, vector<8x128xf32>
      tpu.vector_store %arg6[%c0_131, %c0_132], %327 {strides = array<i32>} : memref<8x128xf32, #tpu.memory_space<vmem>>, vector<8x128xf32>,
      %cst_133 = arith.constant 0.000000e+00 : f32
      %329 = vector.broadcast %cst_133 : f32 to vector<8x128xf32>
      %c0_134 = arith.constant 0 : index
      %c0_135 = arith.constant 0 : index
      %330 = vector.load %arg7[%c0_134, %c0_135] : memref<8x128xf32, #tpu.memory_space<vmem>>, vector<8x128xf32>
      tpu.vector_store %arg7[%c0_134, %c0_135], %329 {strides = array<i32>} : memref<8x128xf32, #tpu.memory_space<vmem>>, vector<8x128xf32>,
    } else {
    }
    %c0 = arith.constant 0 : index
    %c0_1 = arith.constant 0 : index
    %c0_2 = arith.constant 0 : index
    %3 = vector.load %arg2[%c0, %c0_1, %c0_2] : memref<8x8x64xf32, #tpu.memory_space<vmem>>, vector<8x8x64xf32>
    %4 = vector.shape_cast %3 : vector<8x8x64xf32> to vector<64x64xf32>
    %c0_3 = arith.constant 0 : index
    %c0_4 = arith.constant 0 : index
    %5 = vector.load %arg3[%c0_3, %c0_4] : memref<64x512xf32, #tpu.memory_space<vmem>>, vector<64x512xf32>
    %cst = arith.constant dense<0.000000e+00> : vector<64x512xf32>
    %6 = tpu.matmul %4, %5, %cst {dimension_numbers = #tpu.dot_dimension_numbers<[1], [0], [0], [1], [0, 0, 1, 1], [], []>} : vector<64x64xf32>, vector<64x512xf32>, vector<64x512xf32> -> vector<64x512xf32>
    %c0_5 = arith.constant 0 : index
    %c0_6 = arith.constant 0 : index
    %7 = vector.load %arg4[%c0_5, %c0_6] : memref<1x512xf32, #tpu.memory_space<vmem>>, vector<1x512xf32>
    %8 = vector.broadcast %7 : vector<1x512xf32> to vector<64x512xf32>
    %9 = arith.addf %6, %8 : vector<64x512xf32>
    %c0_7 = arith.constant 0 : index
    %c0_8 = arith.constant 0 : index
    %10 = vector.load %arg8[%c0_7, %c0_8] : memref<64x512xf32, #tpu.memory_space<vmem>>, vector<64x512xf32>
    tpu.vector_store %arg8[%c0_7, %c0_8], %9 {strides = array<i32>} : memref<64x512xf32, #tpu.memory_space<vmem>>, vector<64x512xf32>,
    %c0_9 = arith.constant 0 : index
    %c0_10 = arith.constant 0 : index
    %11 = vector.load %arg6[%c0_9, %c0_10] : memref<8x128xf32, #tpu.memory_space<vmem>>, vector<8x128xf32>
    %c0_11 = arith.constant 0 : index
    %c0_12 = arith.constant 0 : index
    %12 = vector.load %arg7[%c0_11, %c0_12] : memref<8x128xf32, #tpu.memory_space<vmem>>, vector<8x128xf32>
    %c0_i32_13 = arith.constant 0 : i32
    %c8_i32 = arith.constant 8 : i32
    %13 = arith.muli %c0_i32_13, %c8_i32 : i32
    %14 = tpu.assume_multiple %13, 8 : i32
    %15 = arith.index_cast %14 : i32 to index
    %c0_14 = arith.constant 0 : index
    %16 = vector.load %arg8[%15, %c0_14] : memref<64x512xf32, #tpu.memory_space<vmem>>, vector<8x512xf32>
    %17 = arith.truncf %11 : vector<8x128xf32> to vector<8x128xbf16>
    %c0_15 = arith.constant 0 : index
    %c0_16 = arith.constant 0 : index
    %18 = vector.load %arg5[%c0_15, %c0_16] : memref<128x512xbf16, #tpu.memory_space<vmem>>, vector<128x512xbf16>
    %cst_17 = arith.constant dense<0.000000e+00> : vector<8x512xf32>
    %19 = tpu.matmul %17, %18, %cst_17 {dimension_numbers = #tpu.dot_dimension_numbers<[1], [0], [0], [1], [0, 0, 1, 1], [], []>} : vector<8x128xbf16>, vector<128x512xbf16>, vector<8x512xf32> -> vector<8x512xf32>
    %20 = arith.addf %16, %19 : vector<8x512xf32>
    %21 = vector.extract_strided_slice %20 {offsets = [0, 0], sizes = [8, 128], strides = [1, 1]} : vector<8x512xf32> to vector<8x128xf32>
    %cst_18 = arith.constant 5.000000e-01 : f32
    %22 = vector.broadcast %cst_18 : f32 to vector<8x128xf32>
    %23 = arith.mulf %22, %21 : vector<8x128xf32>
    %24 = math.tanh %23 : vector<8x128xf32>
    %cst_19 = arith.constant 5.000000e-01 : f32
    %25 = vector.broadcast %cst_19 : f32 to vector<8x128xf32>
    %26 = arith.mulf %25, %24 : vector<8x128xf32>
    %cst_20 = arith.constant 5.000000e-01 : f32
    %27 = vector.broadcast %cst_20 : f32 to vector<8x128xf32>
    %28 = arith.addf %26, %27 : vector<8x128xf32>
    %29 = vector.extract_strided_slice %20 {offsets = [0, 128], sizes = [8, 128], strides = [1, 1]} : vector<8x512xf32> to vector<8x128xf32>
    %cst_21 = arith.constant 5.000000e-01 : f32
    %30 = vector.broadcast %cst_21 : f32 to vector<8x128xf32>
    %31 = arith.mulf %30, %29 : vector<8x128xf32>
    %32 = math.tanh %31 : vector<8x128xf32>
    %cst_22 = arith.constant 5.000000e-01 : f32
    %33 = vector.broadcast %cst_22 : f32 to vector<8x128xf32>
    %34 = arith.mulf %33, %32 : vector<8x128xf32>
    %cst_23 = arith.constant 5.000000e-01 : f32
    %35 = vector.broadcast %cst_23 : f32 to vector<8x128xf32>
    %36 = arith.addf %34, %35 : vector<8x128xf32>
    %37 = vector.extract_strided_slice %20 {offsets = [0, 256], sizes = [8, 128], strides = [1, 1]} : vector<8x512xf32> to vector<8x128xf32>
    %38 = math.tanh %37 : vector<8x128xf32>
    %39 = vector.extract_strided_slice %20 {offsets = [0, 384], sizes = [8, 128], strides = [1, 1]} : vector<8x512xf32> to vector<8x128xf32>
    %cst_24 = arith.constant 5.000000e-01 : f32
    %40 = vector.broadcast %cst_24 : f32 to vector<8x128xf32>
    %41 = arith.mulf %40, %39 : vector<8x128xf32>
    %42 = math.tanh %41 : vector<8x128xf32>
    %cst_25 = arith.constant 5.000000e-01 : f32
    %43 = vector.broadcast %cst_25 : f32 to vector<8x128xf32>
    %44 = arith.mulf %43, %42 : vector<8x128xf32>
    %cst_26 = arith.constant 5.000000e-01 : f32
    %45 = vector.broadcast %cst_26 : f32 to vector<8x128xf32>
    %46 = arith.addf %44, %45 : vector<8x128xf32>
    %47 = arith.mulf %36, %12 : vector<8x128xf32>
    %48 = arith.mulf %28, %38 : vector<8x128xf32>
    %49 = arith.addf %47, %48 : vector<8x128xf32>
    %50 = math.tanh %49 : vector<8x128xf32>
    %51 = arith.mulf %46, %50 : vector<8x128xf32>
    %c1_i32 = arith.constant 1 : i32
    %c8_i32_27 = arith.constant 8 : i32
    %52 = arith.muli %c1_i32, %c8_i32_27 : i32
    %53 = tpu.assume_multiple %52, 8 : i32
    %54 = arith.index_cast %53 : i32 to index
    %c0_28 = arith.constant 0 : index
    %55 = vector.load %arg8[%54, %c0_28] : memref<64x512xf32, #tpu.memory_space<vmem>>, vector<8x512xf32>
    %56 = arith.truncf %51 : vector<8x128xf32> to vector<8x128xbf16>
    %c0_29 = arith.constant 0 : index
    %c0_30 = arith.constant 0 : index
    %57 = vector.load %arg5[%c0_29, %c0_30] : memref<128x512xbf16, #tpu.memory_space<vmem>>, vector<128x512xbf16>
    %cst_31 = arith.constant dense<0.000000e+00> : vector<8x512xf32>
    %58 = tpu.matmul %56, %57, %cst_31 {dimension_numbers = #tpu.dot_dimension_numbers<[1], [0], [0], [1], [0, 0, 1, 1], [], []>} : vector<8x128xbf16>, vector<128x512xbf16>, vector<8x512xf32> -> vector<8x512xf32>
    %59 = arith.addf %55, %58 : vector<8x512xf32>
    %60 = vector.extract_strided_slice %59 {offsets = [0, 0], sizes = [8, 128], strides = [1, 1]} : vector<8x512xf32> to vector<8x128xf32>
    %cst_32 = arith.constant 5.000000e-01 : f32
    %61 = vector.broadcast %cst_32 : f32 to vector<8x128xf32>
    %62 = arith.mulf %61, %60 : vector<8x128xf32>
    %63 = math.tanh %62 : vector<8x128xf32>
    %cst_33 = arith.constant 5.000000e-01 : f32
    %64 = vector.broadcast %cst_33 : f32 to vector<8x128xf32>
    %65 = arith.mulf %64, %63 : vector<8x128xf32>
    %cst_34 = arith.constant 5.000000e-01 : f32
    %66 = vector.broadcast %cst_34 : f32 to vector<8x128xf32>
    %67 = arith.addf %65, %66 : vector<8x128xf32>
    %68 = vector.extract_strided_slice %59 {offsets = [0, 128], sizes = [8, 128], strides = [1, 1]} : vector<8x512xf32> to vector<8x128xf32>
    %cst_35 = arith.constant 5.000000e-01 : f32
    %69 = vector.broadcast %cst_35 : f32 to vector<8x128xf32>
    %70 = arith.mulf %69, %68 : vector<8x128xf32>
    %71 = math.tanh %70 : vector<8x128xf32>
    %cst_36 = arith.constant 5.000000e-01 : f32
    %72 = vector.broadcast %cst_36 : f32 to vector<8x128xf32>
    %73 = arith.mulf %72, %71 : vector<8x128xf32>
    %cst_37 = arith.constant 5.000000e-01 : f32
    %74 = vector.broadcast %cst_37 : f32 to vector<8x128xf32>
    %75 = arith.addf %73, %74 : vector<8x128xf32>
    %76 = vector.extract_strided_slice %59 {offsets = [0, 256], sizes = [8, 128], strides = [1, 1]} : vector<8x512xf32> to vector<8x128xf32>
    %77 = math.tanh %76 : vector<8x128xf32>
    %78 = vector.extract_strided_slice %59 {offsets = [0, 384], sizes = [8, 128], strides = [1, 1]} : vector<8x512xf32> to vector<8x128xf32>
    %cst_38 = arith.constant 5.000000e-01 : f32
    %79 = vector.broadcast %cst_38 : f32 to vector<8x128xf32>
    %80 = arith.mulf %79, %78 : vector<8x128xf32>
    %81 = math.tanh %80 : vector<8x128xf32>
    %cst_39 = arith.constant 5.000000e-01 : f32
    %82 = vector.broadcast %cst_39 : f32 to vector<8x128xf32>
    %83 = arith.mulf %82, %81 : vector<8x128xf32>
    %cst_40 = arith.constant 5.000000e-01 : f32
    %84 = vector.broadcast %cst_40 : f32 to vector<8x128xf32>
    %85 = arith.addf %83, %84 : vector<8x128xf32>
    %86 = arith.mulf %75, %49 : vector<8x128xf32>
    %87 = arith.mulf %67, %77 : vector<8x128xf32>
    %88 = arith.addf %86, %87 : vector<8x128xf32>
    %89 = math.tanh %88 : vector<8x128xf32>
    %90 = arith.mulf %85, %89 : vector<8x128xf32>
    %c2_i32 = arith.constant 2 : i32
    %c8_i32_41 = arith.constant 8 : i32
    %91 = arith.muli %c2_i32, %c8_i32_41 : i32
    %92 = tpu.assume_multiple %91, 8 : i32
    %93 = arith.index_cast %92 : i32 to index
    %c0_42 = arith.constant 0 : index
    %94 = vector.load %arg8[%93, %c0_42] : memref<64x512xf32, #tpu.memory_space<vmem>>, vector<8x512xf32>
    %95 = arith.truncf %90 : vector<8x128xf32> to vector<8x128xbf16>
    %c0_43 = arith.constant 0 : index
    %c0_44 = arith.constant 0 : index
    %96 = vector.load %arg5[%c0_43, %c0_44] : memref<128x512xbf16, #tpu.memory_space<vmem>>, vector<128x512xbf16>
    %cst_45 = arith.constant dense<0.000000e+00> : vector<8x512xf32>
    %97 = tpu.matmul %95, %96, %cst_45 {dimension_numbers = #tpu.dot_dimension_numbers<[1], [0], [0], [1], [0, 0, 1, 1], [], []>} : vector<8x128xbf16>, vector<128x512xbf16>, vector<8x512xf32> -> vector<8x512xf32>
    %98 = arith.addf %94, %97 : vector<8x512xf32>
    %99 = vector.extract_strided_slice %98 {offsets = [0, 0], sizes = [8, 128], strides = [1, 1]} : vector<8x512xf32> to vector<8x128xf32>
    %cst_46 = arith.constant 5.000000e-01 : f32
    %100 = vector.broadcast %cst_46 : f32 to vector<8x128xf32>
    %101 = arith.mulf %100, %99 : vector<8x128xf32>
    %102 = math.tanh %101 : vector<8x128xf32>
    %cst_47 = arith.constant 5.000000e-01 : f32
    %103 = vector.broadcast %cst_47 : f32 to vector<8x128xf32>
    %104 = arith.mulf %103, %102 : vector<8x128xf32>
    %cst_48 = arith.constant 5.000000e-01 : f32
    %105 = vector.broadcast %cst_48 : f32 to vector<8x128xf32>
    %106 = arith.addf %104, %105 : vector<8x128xf32>
    %107 = vector.extract_strided_slice %98 {offsets = [0, 128], sizes = [8, 128], strides = [1, 1]} : vector<8x512xf32> to vector<8x128xf32>
    %cst_49 = arith.constant 5.000000e-01 : f32
    %108 = vector.broadcast %cst_49 : f32 to vector<8x128xf32>
    %109 = arith.mulf %108, %107 : vector<8x128xf32>
    %110 = math.tanh %109 : vector<8x128xf32>
    %cst_50 = arith.constant 5.000000e-01 : f32
    %111 = vector.broadcast %cst_50 : f32 to vector<8x128xf32>
    %112 = arith.mulf %111, %110 : vector<8x128xf32>
    %cst_51 = arith.constant 5.000000e-01 : f32
    %113 = vector.broadcast %cst_51 : f32 to vector<8x128xf32>
    %114 = arith.addf %112, %113 : vector<8x128xf32>
    %115 = vector.extract_strided_slice %98 {offsets = [0, 256], sizes = [8, 128], strides = [1, 1]} : vector<8x512xf32> to vector<8x128xf32>
    %116 = math.tanh %115 : vector<8x128xf32>
    %117 = vector.extract_strided_slice %98 {offsets = [0, 384], sizes = [8, 128], strides = [1, 1]} : vector<8x512xf32> to vector<8x128xf32>
    %cst_52 = arith.constant 5.000000e-01 : f32
    %118 = vector.broadcast %cst_52 : f32 to vector<8x128xf32>
    %119 = arith.mulf %118, %117 : vector<8x128xf32>
    %120 = math.tanh %119 : vector<8x128xf32>
    %cst_53 = arith.constant 5.000000e-01 : f32
    %121 = vector.broadcast %cst_53 : f32 to vector<8x128xf32>
    %122 = arith.mulf %121, %120 : vector<8x128xf32>
    %cst_54 = arith.constant 5.000000e-01 : f32
    %123 = vector.broadcast %cst_54 : f32 to vector<8x128xf32>
    %124 = arith.addf %122, %123 : vector<8x128xf32>
    %125 = arith.mulf %114, %88 : vector<8x128xf32>
    %126 = arith.mulf %106, %116 : vector<8x128xf32>
    %127 = arith.addf %125, %126 : vector<8x128xf32>
    %128 = math.tanh %127 : vector<8x128xf32>
    %129 = arith.mulf %124, %128 : vector<8x128xf32>
    %c3_i32 = arith.constant 3 : i32
    %c8_i32_55 = arith.constant 8 : i32
    %130 = arith.muli %c3_i32, %c8_i32_55 : i32
    %131 = tpu.assume_multiple %130, 8 : i32
    %132 = arith.index_cast %131 : i32 to index
    %c0_56 = arith.constant 0 : index
    %133 = vector.load %arg8[%132, %c0_56] : memref<64x512xf32, #tpu.memory_space<vmem>>, vector<8x512xf32>
    %134 = arith.truncf %129 : vector<8x128xf32> to vector<8x128xbf16>
    %c0_57 = arith.constant 0 : index
    %c0_58 = arith.constant 0 : index
    %135 = vector.load %arg5[%c0_57, %c0_58] : memref<128x512xbf16, #tpu.memory_space<vmem>>, vector<128x512xbf16>
    %cst_59 = arith.constant dense<0.000000e+00> : vector<8x512xf32>
    %136 = tpu.matmul %134, %135, %cst_59 {dimension_numbers = #tpu.dot_dimension_numbers<[1], [0], [0], [1], [0, 0, 1, 1], [], []>} : vector<8x128xbf16>, vector<128x512xbf16>, vector<8x512xf32> -> vector<8x512xf32>
    %137 = arith.addf %133, %136 : vector<8x512xf32>
    %138 = vector.extract_strided_slice %137 {offsets = [0, 0], sizes = [8, 128], strides = [1, 1]} : vector<8x512xf32> to vector<8x128xf32>
    %cst_60 = arith.constant 5.000000e-01 : f32
    %139 = vector.broadcast %cst_60 : f32 to vector<8x128xf32>
    %140 = arith.mulf %139, %138 : vector<8x128xf32>
    %141 = math.tanh %140 : vector<8x128xf32>
    %cst_61 = arith.constant 5.000000e-01 : f32
    %142 = vector.broadcast %cst_61 : f32 to vector<8x128xf32>
    %143 = arith.mulf %142, %141 : vector<8x128xf32>
    %cst_62 = arith.constant 5.000000e-01 : f32
    %144 = vector.broadcast %cst_62 : f32 to vector<8x128xf32>
    %145 = arith.addf %143, %144 : vector<8x128xf32>
    %146 = vector.extract_strided_slice %137 {offsets = [0, 128], sizes = [8, 128], strides = [1, 1]} : vector<8x512xf32> to vector<8x128xf32>
    %cst_63 = arith.constant 5.000000e-01 : f32
    %147 = vector.broadcast %cst_63 : f32 to vector<8x128xf32>
    %148 = arith.mulf %147, %146 : vector<8x128xf32>
    %149 = math.tanh %148 : vector<8x128xf32>
    %cst_64 = arith.constant 5.000000e-01 : f32
    %150 = vector.broadcast %cst_64 : f32 to vector<8x128xf32>
    %151 = arith.mulf %150, %149 : vector<8x128xf32>
    %cst_65 = arith.constant 5.000000e-01 : f32
    %152 = vector.broadcast %cst_65 : f32 to vector<8x128xf32>
    %153 = arith.addf %151, %152 : vector<8x128xf32>
    %154 = vector.extract_strided_slice %137 {offsets = [0, 256], sizes = [8, 128], strides = [1, 1]} : vector<8x512xf32> to vector<8x128xf32>
    %155 = math.tanh %154 : vector<8x128xf32>
    %156 = vector.extract_strided_slice %137 {offsets = [0, 384], sizes = [8, 128], strides = [1, 1]} : vector<8x512xf32> to vector<8x128xf32>
    %cst_66 = arith.constant 5.000000e-01 : f32
    %157 = vector.broadcast %cst_66 : f32 to vector<8x128xf32>
    %158 = arith.mulf %157, %156 : vector<8x128xf32>
    %159 = math.tanh %158 : vector<8x128xf32>
    %cst_67 = arith.constant 5.000000e-01 : f32
    %160 = vector.broadcast %cst_67 : f32 to vector<8x128xf32>
    %161 = arith.mulf %160, %159 : vector<8x128xf32>
    %cst_68 = arith.constant 5.000000e-01 : f32
    %162 = vector.broadcast %cst_68 : f32 to vector<8x128xf32>
    %163 = arith.addf %161, %162 : vector<8x128xf32>
    %164 = arith.mulf %153, %127 : vector<8x128xf32>
    %165 = arith.mulf %145, %155 : vector<8x128xf32>
    %166 = arith.addf %164, %165 : vector<8x128xf32>
    %167 = math.tanh %166 : vector<8x128xf32>
    %168 = arith.mulf %163, %167 : vector<8x128xf32>
    %c4_i32 = arith.constant 4 : i32
    %c8_i32_69 = arith.constant 8 : i32
    %169 = arith.muli %c4_i32, %c8_i32_69 : i32
    %170 = tpu.assume_multiple %169, 8 : i32
    %171 = arith.index_cast %170 : i32 to index
    %c0_70 = arith.constant 0 : index
    %172 = vector.load %arg8[%171, %c0_70] : memref<64x512xf32, #tpu.memory_space<vmem>>, vector<8x512xf32>
    %173 = arith.truncf %168 : vector<8x128xf32> to vector<8x128xbf16>
    %c0_71 = arith.constant 0 : index
    %c0_72 = arith.constant 0 : index
    %174 = vector.load %arg5[%c0_71, %c0_72] : memref<128x512xbf16, #tpu.memory_space<vmem>>, vector<128x512xbf16>
    %cst_73 = arith.constant dense<0.000000e+00> : vector<8x512xf32>
    %175 = tpu.matmul %173, %174, %cst_73 {dimension_numbers = #tpu.dot_dimension_numbers<[1], [0], [0], [1], [0, 0, 1, 1], [], []>} : vector<8x128xbf16>, vector<128x512xbf16>, vector<8x512xf32> -> vector<8x512xf32>
    %176 = arith.addf %172, %175 : vector<8x512xf32>
    %177 = vector.extract_strided_slice %176 {offsets = [0, 0], sizes = [8, 128], strides = [1, 1]} : vector<8x512xf32> to vector<8x128xf32>
    %cst_74 = arith.constant 5.000000e-01 : f32
    %178 = vector.broadcast %cst_74 : f32 to vector<8x128xf32>
    %179 = arith.mulf %178, %177 : vector<8x128xf32>
    %180 = math.tanh %179 : vector<8x128xf32>
    %cst_75 = arith.constant 5.000000e-01 : f32
    %181 = vector.broadcast %cst_75 : f32 to vector<8x128xf32>
    %182 = arith.mulf %181, %180 : vector<8x128xf32>
    %cst_76 = arith.constant 5.000000e-01 : f32
    %183 = vector.broadcast %cst_76 : f32 to vector<8x128xf32>
    %184 = arith.addf %182, %183 : vector<8x128xf32>
    %185 = vector.extract_strided_slice %176 {offsets = [0, 128], sizes = [8, 128], strides = [1, 1]} : vector<8x512xf32> to vector<8x128xf32>
    %cst_77 = arith.constant 5.000000e-01 : f32
    %186 = vector.broadcast %cst_77 : f32 to vector<8x128xf32>
    %187 = arith.mulf %186, %185 : vector<8x128xf32>
    %188 = math.tanh %187 : vector<8x128xf32>
    %cst_78 = arith.constant 5.000000e-01 : f32
    %189 = vector.broadcast %cst_78 : f32 to vector<8x128xf32>
    %190 = arith.mulf %189, %188 : vector<8x128xf32>
    %cst_79 = arith.constant 5.000000e-01 : f32
    %191 = vector.broadcast %cst_79 : f32 to vector<8x128xf32>
    %192 = arith.addf %190, %191 : vector<8x128xf32>
    %193 = vector.extract_strided_slice %176 {offsets = [0, 256], sizes = [8, 128], strides = [1, 1]} : vector<8x512xf32> to vector<8x128xf32>
    %194 = math.tanh %193 : vector<8x128xf32>
    %195 = vector.extract_strided_slice %176 {offsets = [0, 384], sizes = [8, 128], strides = [1, 1]} : vector<8x512xf32> to vector<8x128xf32>
    %cst_80 = arith.constant 5.000000e-01 : f32
    %196 = vector.broadcast %cst_80 : f32 to vector<8x128xf32>
    %197 = arith.mulf %196, %195 : vector<8x128xf32>
    %198 = math.tanh %197 : vector<8x128xf32>
    %cst_81 = arith.constant 5.000000e-01 : f32
    %199 = vector.broadcast %cst_81 : f32 to vector<8x128xf32>
    %200 = arith.mulf %199, %198 : vector<8x128xf32>
    %cst_82 = arith.constant 5.000000e-01 : f32
    %201 = vector.broadcast %cst_82 : f32 to vector<8x128xf32>
    %202 = arith.addf %200, %201 : vector<8x128xf32>
    %203 = arith.mulf %192, %166 : vector<8x128xf32>
    %204 = arith.mulf %184, %194 : vector<8x128xf32>
    %205 = arith.addf %203, %204 : vector<8x128xf32>
    %206 = math.tanh %205 : vector<8x128xf32>
    %207 = arith.mulf %202, %206 : vector<8x128xf32>
    %c5_i32 = arith.constant 5 : i32
    %c8_i32_83 = arith.constant 8 : i32
    %208 = arith.muli %c5_i32, %c8_i32_83 : i32
    %209 = tpu.assume_multiple %208, 8 : i32
    %210 = arith.index_cast %209 : i32 to index
    %c0_84 = arith.constant 0 : index
    %211 = vector.load %arg8[%210, %c0_84] : memref<64x512xf32, #tpu.memory_space<vmem>>, vector<8x512xf32>
    %212 = arith.truncf %207 : vector<8x128xf32> to vector<8x128xbf16>
    %c0_85 = arith.constant 0 : index
    %c0_86 = arith.constant 0 : index
    %213 = vector.load %arg5[%c0_85, %c0_86] : memref<128x512xbf16, #tpu.memory_space<vmem>>, vector<128x512xbf16>
    %cst_87 = arith.constant dense<0.000000e+00> : vector<8x512xf32>
    %214 = tpu.matmul %212, %213, %cst_87 {dimension_numbers = #tpu.dot_dimension_numbers<[1], [0], [0], [1], [0, 0, 1, 1], [], []>} : vector<8x128xbf16>, vector<128x512xbf16>, vector<8x512xf32> -> vector<8x512xf32>
    %215 = arith.addf %211, %214 : vector<8x512xf32>
    %216 = vector.extract_strided_slice %215 {offsets = [0, 0], sizes = [8, 128], strides = [1, 1]} : vector<8x512xf32> to vector<8x128xf32>
    %cst_88 = arith.constant 5.000000e-01 : f32
    %217 = vector.broadcast %cst_88 : f32 to vector<8x128xf32>
    %218 = arith.mulf %217, %216 : vector<8x128xf32>
    %219 = math.tanh %218 : vector<8x128xf32>
    %cst_89 = arith.constant 5.000000e-01 : f32
    %220 = vector.broadcast %cst_89 : f32 to vector<8x128xf32>
    %221 = arith.mulf %220, %219 : vector<8x128xf32>
    %cst_90 = arith.constant 5.000000e-01 : f32
    %222 = vector.broadcast %cst_90 : f32 to vector<8x128xf32>
    %223 = arith.addf %221, %222 : vector<8x128xf32>
    %224 = vector.extract_strided_slice %215 {offsets = [0, 128], sizes = [8, 128], strides = [1, 1]} : vector<8x512xf32> to vector<8x128xf32>
    %cst_91 = arith.constant 5.000000e-01 : f32
    %225 = vector.broadcast %cst_91 : f32 to vector<8x128xf32>
    %226 = arith.mulf %225, %224 : vector<8x128xf32>
    %227 = math.tanh %226 : vector<8x128xf32>
    %cst_92 = arith.constant 5.000000e-01 : f32
    %228 = vector.broadcast %cst_92 : f32 to vector<8x128xf32>
    %229 = arith.mulf %228, %227 : vector<8x128xf32>
    %cst_93 = arith.constant 5.000000e-01 : f32
    %230 = vector.broadcast %cst_93 : f32 to vector<8x128xf32>
    %231 = arith.addf %229, %230 : vector<8x128xf32>
    %232 = vector.extract_strided_slice %215 {offsets = [0, 256], sizes = [8, 128], strides = [1, 1]} : vector<8x512xf32> to vector<8x128xf32>
    %233 = math.tanh %232 : vector<8x128xf32>
    %234 = vector.extract_strided_slice %215 {offsets = [0, 384], sizes = [8, 128], strides = [1, 1]} : vector<8x512xf32> to vector<8x128xf32>
    %cst_94 = arith.constant 5.000000e-01 : f32
    %235 = vector.broadcast %cst_94 : f32 to vector<8x128xf32>
    %236 = arith.mulf %235, %234 : vector<8x128xf32>
    %237 = math.tanh %236 : vector<8x128xf32>
    %cst_95 = arith.constant 5.000000e-01 : f32
    %238 = vector.broadcast %cst_95 : f32 to vector<8x128xf32>
    %239 = arith.mulf %238, %237 : vector<8x128xf32>
    %cst_96 = arith.constant 5.000000e-01 : f32
    %240 = vector.broadcast %cst_96 : f32 to vector<8x128xf32>
    %241 = arith.addf %239, %240 : vector<8x128xf32>
    %242 = arith.mulf %231, %205 : vector<8x128xf32>
    %243 = arith.mulf %223, %233 : vector<8x128xf32>
    %244 = arith.addf %242, %243 : vector<8x128xf32>
    %245 = math.tanh %244 : vector<8x128xf32>
    %246 = arith.mulf %241, %245 : vector<8x128xf32>
    %c6_i32 = arith.constant 6 : i32
    %c8_i32_97 = arith.constant 8 : i32
    %247 = arith.muli %c6_i32, %c8_i32_97 : i32
    %248 = tpu.assume_multiple %247, 8 : i32
    %249 = arith.index_cast %248 : i32 to index
    %c0_98 = arith.constant 0 : index
    %250 = vector.load %arg8[%249, %c0_98] : memref<64x512xf32, #tpu.memory_space<vmem>>, vector<8x512xf32>
    %251 = arith.truncf %246 : vector<8x128xf32> to vector<8x128xbf16>
    %c0_99 = arith.constant 0 : index
    %c0_100 = arith.constant 0 : index
    %252 = vector.load %arg5[%c0_99, %c0_100] : memref<128x512xbf16, #tpu.memory_space<vmem>>, vector<128x512xbf16>
    %cst_101 = arith.constant dense<0.000000e+00> : vector<8x512xf32>
    %253 = tpu.matmul %251, %252, %cst_101 {dimension_numbers = #tpu.dot_dimension_numbers<[1], [0], [0], [1], [0, 0, 1, 1], [], []>} : vector<8x128xbf16>, vector<128x512xbf16>, vector<8x512xf32> -> vector<8x512xf32>
    %254 = arith.addf %250, %253 : vector<8x512xf32>
    %255 = vector.extract_strided_slice %254 {offsets = [0, 0], sizes = [8, 128], strides = [1, 1]} : vector<8x512xf32> to vector<8x128xf32>
    %cst_102 = arith.constant 5.000000e-01 : f32
    %256 = vector.broadcast %cst_102 : f32 to vector<8x128xf32>
    %257 = arith.mulf %256, %255 : vector<8x128xf32>
    %258 = math.tanh %257 : vector<8x128xf32>
    %cst_103 = arith.constant 5.000000e-01 : f32
    %259 = vector.broadcast %cst_103 : f32 to vector<8x128xf32>
    %260 = arith.mulf %259, %258 : vector<8x128xf32>
    %cst_104 = arith.constant 5.000000e-01 : f32
    %261 = vector.broadcast %cst_104 : f32 to vector<8x128xf32>
    %262 = arith.addf %260, %261 : vector<8x128xf32>
    %263 = vector.extract_strided_slice %254 {offsets = [0, 128], sizes = [8, 128], strides = [1, 1]} : vector<8x512xf32> to vector<8x128xf32>
    %cst_105 = arith.constant 5.000000e-01 : f32
    %264 = vector.broadcast %cst_105 : f32 to vector<8x128xf32>
    %265 = arith.mulf %264, %263 : vector<8x128xf32>
    %266 = math.tanh %265 : vector<8x128xf32>
    %cst_106 = arith.constant 5.000000e-01 : f32
    %267 = vector.broadcast %cst_106 : f32 to vector<8x128xf32>
    %268 = arith.mulf %267, %266 : vector<8x128xf32>
    %cst_107 = arith.constant 5.000000e-01 : f32
    %269 = vector.broadcast %cst_107 : f32 to vector<8x128xf32>
    %270 = arith.addf %268, %269 : vector<8x128xf32>
    %271 = vector.extract_strided_slice %254 {offsets = [0, 256], sizes = [8, 128], strides = [1, 1]} : vector<8x512xf32> to vector<8x128xf32>
    %272 = math.tanh %271 : vector<8x128xf32>
    %273 = vector.extract_strided_slice %254 {offsets = [0, 384], sizes = [8, 128], strides = [1, 1]} : vector<8x512xf32> to vector<8x128xf32>
    %cst_108 = arith.constant 5.000000e-01 : f32
    %274 = vector.broadcast %cst_108 : f32 to vector<8x128xf32>
    %275 = arith.mulf %274, %273 : vector<8x128xf32>
    %276 = math.tanh %275 : vector<8x128xf32>
    %cst_109 = arith.constant 5.000000e-01 : f32
    %277 = vector.broadcast %cst_109 : f32 to vector<8x128xf32>
    %278 = arith.mulf %277, %276 : vector<8x128xf32>
    %cst_110 = arith.constant 5.000000e-01 : f32
    %279 = vector.broadcast %cst_110 : f32 to vector<8x128xf32>
    %280 = arith.addf %278, %279 : vector<8x128xf32>
    %281 = arith.mulf %270, %244 : vector<8x128xf32>
    %282 = arith.mulf %262, %272 : vector<8x128xf32>
    %283 = arith.addf %281, %282 : vector<8x128xf32>
    %284 = math.tanh %283 : vector<8x128xf32>
    %285 = arith.mulf %280, %284 : vector<8x128xf32>
    %c7_i32 = arith.constant 7 : i32
    %c8_i32_111 = arith.constant 8 : i32
    %286 = arith.muli %c7_i32, %c8_i32_111 : i32
    %287 = tpu.assume_multiple %286, 8 : i32
    %288 = arith.index_cast %287 : i32 to index
    %c0_112 = arith.constant 0 : index
    %289 = vector.load %arg8[%288, %c0_112] : memref<64x512xf32, #tpu.memory_space<vmem>>, vector<8x512xf32>
    %290 = arith.truncf %285 : vector<8x128xf32> to vector<8x128xbf16>
    %c0_113 = arith.constant 0 : index
    %c0_114 = arith.constant 0 : index
    %291 = vector.load %arg5[%c0_113, %c0_114] : memref<128x512xbf16, #tpu.memory_space<vmem>>, vector<128x512xbf16>
    %cst_115 = arith.constant dense<0.000000e+00> : vector<8x512xf32>
    %292 = tpu.matmul %290, %291, %cst_115 {dimension_numbers = #tpu.dot_dimension_numbers<[1], [0], [0], [1], [0, 0, 1, 1], [], []>} : vector<8x128xbf16>, vector<128x512xbf16>, vector<8x512xf32> -> vector<8x512xf32>
    %293 = arith.addf %289, %292 : vector<8x512xf32>
    %294 = vector.extract_strided_slice %293 {offsets = [0, 0], sizes = [8, 128], strides = [1, 1]} : vector<8x512xf32> to vector<8x128xf32>
    %cst_116 = arith.constant 5.000000e-01 : f32
    %295 = vector.broadcast %cst_116 : f32 to vector<8x128xf32>
    %296 = arith.mulf %295, %294 : vector<8x128xf32>
    %297 = math.tanh %296 : vector<8x128xf32>
    %cst_117 = arith.constant 5.000000e-01 : f32
    %298 = vector.broadcast %cst_117 : f32 to vector<8x128xf32>
    %299 = arith.mulf %298, %297 : vector<8x128xf32>
    %cst_118 = arith.constant 5.000000e-01 : f32
    %300 = vector.broadcast %cst_118 : f32 to vector<8x128xf32>
    %301 = arith.addf %299, %300 : vector<8x128xf32>
    %302 = vector.extract_strided_slice %293 {offsets = [0, 128], sizes = [8, 128], strides = [1, 1]} : vector<8x512xf32> to vector<8x128xf32>
    %cst_119 = arith.constant 5.000000e-01 : f32
    %303 = vector.broadcast %cst_119 : f32 to vector<8x128xf32>
    %304 = arith.mulf %303, %302 : vector<8x128xf32>
    %305 = math.tanh %304 : vector<8x128xf32>
    %cst_120 = arith.constant 5.000000e-01 : f32
    %306 = vector.broadcast %cst_120 : f32 to vector<8x128xf32>
    %307 = arith.mulf %306, %305 : vector<8x128xf32>
    %cst_121 = arith.constant 5.000000e-01 : f32
    %308 = vector.broadcast %cst_121 : f32 to vector<8x128xf32>
    %309 = arith.addf %307, %308 : vector<8x128xf32>
    %310 = vector.extract_strided_slice %293 {offsets = [0, 256], sizes = [8, 128], strides = [1, 1]} : vector<8x512xf32> to vector<8x128xf32>
    %311 = math.tanh %310 : vector<8x128xf32>
    %312 = vector.extract_strided_slice %293 {offsets = [0, 384], sizes = [8, 128], strides = [1, 1]} : vector<8x512xf32> to vector<8x128xf32>
    %cst_122 = arith.constant 5.000000e-01 : f32
    %313 = vector.broadcast %cst_122 : f32 to vector<8x128xf32>
    %314 = arith.mulf %313, %312 : vector<8x128xf32>
    %315 = math.tanh %314 : vector<8x128xf32>
    %cst_123 = arith.constant 5.000000e-01 : f32
    %316 = vector.broadcast %cst_123 : f32 to vector<8x128xf32>
    %317 = arith.mulf %316, %315 : vector<8x128xf32>
    %cst_124 = arith.constant 5.000000e-01 : f32
    %318 = vector.broadcast %cst_124 : f32 to vector<8x128xf32>
    %319 = arith.addf %317, %318 : vector<8x128xf32>
    %320 = arith.mulf %309, %283 : vector<8x128xf32>
    %321 = arith.mulf %301, %311 : vector<8x128xf32>
    %322 = arith.addf %320, %321 : vector<8x128xf32>
    %323 = math.tanh %322 : vector<8x128xf32>
    %324 = arith.mulf %319, %323 : vector<8x128xf32>
    %c8_i32_125 = arith.constant 8 : i32
    %c0_126 = arith.constant 0 : index
    %c0_127 = arith.constant 0 : index
    %325 = vector.load %arg6[%c0_126, %c0_127] : memref<8x128xf32, #tpu.memory_space<vmem>>, vector<8x128xf32>
    tpu.vector_store %arg6[%c0_126, %c0_127], %324 {strides = array<i32>} : memref<8x128xf32, #tpu.memory_space<vmem>>, vector<8x128xf32>,
    %c0_128 = arith.constant 0 : index
    %c0_129 = arith.constant 0 : index
    %326 = vector.load %arg7[%c0_128, %c0_129] : memref<8x128xf32, #tpu.memory_space<vmem>>, vector<8x128xf32>
    tpu.vector_store %arg7[%c0_128, %c0_129], %322 {strides = array<i32>} : memref<8x128xf32, #tpu.memory_space<vmem>>, vector<8x128xf32>,
    return
  }
  func.func @transform_0(%arg0: i32, %arg1: i32) -> (i32, i32, i32) {
    %c0_i32 = arith.constant 0 : i32
    %c0_i32_0 = arith.constant 0 : i32
    return %arg1, %arg0, %c0_i32 : i32, i32, i32
  }
  func.func @transform_1(%arg0: i32, %arg1: i32) -> (i32, i32) {
    %c0_i32 = arith.constant 0 : i32
    %c0_i32_0 = arith.constant 0 : i32
    %c0_i32_1 = arith.constant 0 : i32
    return %c0_i32, %c0_i32_0 : i32, i32
  }
  func.func @transform_2(%arg0: i32, %arg1: i32) -> (i32, i32) {
    %c0_i32 = arith.constant 0 : i32
    %c0_i32_0 = arith.constant 0 : i32
    %c0_i32_1 = arith.constant 0 : i32
    return %c0_i32, %c0_i32_0 : i32, i32
  }
  func.func @transform_3(%arg0: i32, %arg1: i32) -> (i32, i32) {
    %c0_i32 = arith.constant 0 : i32
    %c0_i32_0 = arith.constant 0 : i32
    %c0_i32_1 = arith.constant 0 : i32
    return %c0_i32, %c0_i32_0 : i32, i32
  }
  func.func @transform_4(%arg0: i32, %arg1: i32) -> (i32, i32) {
    %c0_i32 = arith.constant 0 : i32
    %c0_i32_0 = arith.constant 0 : i32
    return %arg0, %c0_i32 : i32, i32
  }
}

</mosaic_0001>

<llo_original>
// kernel: model_forward.1
$region0: #{model_forward.1}
  #allocation0 [shape = 'u32[]', space=smem, size = 0x4, offset = 0x4, fixed_abs, tag = 'smem constant byte address 0x4 - core index']
  #allocation1 [shape = 'u32[144,128]{1,0:T(1,128)}', space=vmem, size = 0x12000, scoped, tag = 'internal scratch']
  #allocation2 [shape = 'f32[8,128]{1,0:T(8,128)}', space=vmem, size = 0x1000, scoped, tag = 'scratch operand']
  #allocation3 [shape = 'f32[64,512]{1,0:T(8,128)}', space=vmem, size = 0x20000, scoped, tag = 'scratch operand']
  %s0 = inlined_call_operand.vmem [shape: f32[8,8,64], index: 0, kind: input, shape index: {}]
  %s1 = inlined_call_operand.vmem [shape: f32[64,512], index: 1, kind: input, shape index: {}]
  %s2 = inlined_call_operand.vmem [shape: f32[1,512], index: 2, kind: input, shape index: {}]
  %s3 = inlined_call_operand.vmem [shape: bf16[128,512], index: 3, kind: input, shape index: {}]
  %s4 = inlined_call_operand.vmem [shape: f32[8,128], index: 4, kind: output, shape index: {}]
  %s5 = sld [smem:[#allocation0]]
  $region30: #{model_forward.1} parent=0
    _
  %s7 = ssub.s32 1, %s5
  %s8 = scalar_select 0, %s7, %s5
  // Predicated region
  $region2: #{model_forward.1} parent=0 // pred_check
    _
  $region3: #{model_forward.1} parent=0 // pred_check_branch
    %10 = sbr.rel (0) target = $region5
  $region4: #{model_forward.1} parent=0 // pred_region
    _
  $region5: #{model_forward.1} parent=0 // pred_fallthru
    _
  // Predicated region
  $region6: #{model_forward.1} parent=0 // pred_check
    _
  $region7: #{model_forward.1} parent=0 // pred_check_branch
    %12 = sbr.rel (0) target = $region9
  $region8: #{model_forward.1} parent=0 // pred_region
    _
  $region9: #{model_forward.1} parent=0 // pred_fallthru
    _
  // Predicated region
  $region10: #{model_forward.1} parent=0 // pred_check
    _
  $region11: #{model_forward.1} parent=0 // pred_check_branch
    %14 = sbr.rel (0) target = $region13
  $region12: #{model_forward.1} parent=0 // pred_region
    _
  $region13: #{model_forward.1} parent=0 // pred_fallthru
    _
  // Predicated region
  $region14: #{model_forward.1} parent=0 // pred_check
    _
  $region15: #{model_forward.1} parent=0 // pred_check_branch
    %16 = sbr.rel (0) target = $region17
  $region16: #{model_forward.1} parent=0 // pred_region
    _
  $region17: #{model_forward.1} parent=0 // pred_fallthru
    _
  %p18 = scmp.eq.s32.totalorder 0, 0
  // Predicated region
  $region18: #{model_forward.1} parent=0 // pred_check
    %p19 = pneg %p18
  $region19: #{model_forward.1} parent=0 // pred_check_branch
    %21 = sbr.rel (%p19) target = $region21
  $region20: #{model_forward.1} parent=0 // pred_region
    %22 = vst [vmem:[%s4] sm:$0xff] 0.0
    %23 = vst [vmem:[#allocation2] sm:$0xff] 0.0
  $region21: #{model_forward.1} parent=0 // pred_fallthru
    _
  %v24 = vld [vmem:[%s0] sm:$0xff]
  %v25 = vld [vmem:[%s0 + $0x8] sm:$0xff]
  %v26 = vld [vmem:[%s0 + $0x10] sm:$0xff]
  %v27 = vld [vmem:[%s0 + $0x18] sm:$0xff]
  %v28 = vld [vmem:[%s0 + $0x20] sm:$0xff]
  %v29 = vld [vmem:[%s0 + $0x28] sm:$0xff]
  %v30 = vld [vmem:[%s0 + $0x30] sm:$0xff]
  %v31 = vld [vmem:[%s0 + $0x38] sm:$0xff]
  %v32 = vld [vmem:[%s1] sm:$0xff]
  %v33 = vld [vmem:[%s1 + $0x8] sm:$0xff]
  %v34 = vld [vmem:[%s1 + $0x10] sm:$0xff]
  %v35 = vld [vmem:[%s1 + $0x18] sm:$0xff]
  %v36 = vld [vmem:[%s1 + $0x20] sm:$0xff]
  %v37 = vld [vmem:[%s1 + $0x28] sm:$0xff]
  %v38 = vld [vmem:[%s1 + $0x30] sm:$0xff]
  %v39 = vld [vmem:[%s1 + $0x38] sm:$0xff]
  %v40 = vld [vmem:[%s1 + $0x40] sm:$0xff]
  %v41 = vld [vmem:[%s1 + $0x48] sm:$0xff]
  %v42 = vld [vmem:[%s1 + $0x50] sm:$0xff]
  %v43 = vld [vmem:[%s1 + $0x58] sm:$0xff]
  %v44 = vld [vmem:[%s1 + $0x60] sm:$0xff]
  %v45 = vld [vmem:[%s1 + $0x68] sm:$0xff]
  %v46 = vld [vmem:[%s1 + $0x70] sm:$0xff]
  %v47 = vld [vmem:[%s1 + $0x78] sm:$0xff]
  %v48 = vld [vmem:[%s1 + $0x80] sm:$0xff]
  %v49 = vld [vmem:[%s1 + $0x88] sm:$0xff]
  %v50 = vld [vmem:[%s1 + $0x90] sm:$0xff]
  %v51 = vld [vmem:[%s1 + $0x98] sm:$0xff]
  %v52 = vld [vmem:[%s1 + $0xa0] sm:$0xff]
  %v53 = vld [vmem:[%s1 + $0xa8] sm:$0xff]
  %v54 = vld [vmem:[%s1 + $0xb0] sm:$0xff]
  %v55 = vld [vmem:[%s1 + $0xb8] sm:$0xff]
  %v56 = vld [vmem:[%s1 + $0xc0] sm:$0xff]
  %v57 = vld [vmem:[%s1 + $0xc8] sm:$0xff]
  %v58 = vld [vmem:[%s1 + $0xd0] sm:$0xff]
  %v59 = vld [vmem:[%s1 + $0xd8] sm:$0xff]
  %v60 = vld [vmem:[%s1 + $0xe0] sm:$0xff]
  %v61 = vld [vmem:[%s1 + $0xe8] sm:$0xff]
  %v62 = vld [vmem:[%s1 + $0xf0] sm:$0xff]
  %v63 = vld [vmem:[%s1 + $0xf8] sm:$0xff]
  %v64 = vld [vmem:[%s2] sm:$0xf]
  %v66 = vlaneseq
  %v67 = vshrl.u32 %v66, 7
  %v68 = vsub.s32 0, %v67
  %v69 = vrot.slane %v64, %v68
  %v70 = vlaneseq
  %v71 = vshrl.u32 %v70, 7
  %v72 = vsub.s32 1, %v71
  %v73 = vrot.slane %v64, %v72
  %v74 = vlaneseq
  %v75 = vshrl.u32 %v74, 7
  %v76 = vsub.s32 2, %v75
  %v77 = vrot.slane %v64, %v76
  %v78 = vlaneseq
  %v79 = vshrl.u32 %v78, 7
  %v80 = vsub.s32 3, %v79
  %v81 = vrot.slane %v64, %v80
  %vm86 = vcmask 523264
  %v88 = vsel %vm86, %v24, 0
  %v91 = vsel %vm86, %v25, 0
  %v94 = vsel %vm86, %v26, 0
  %v97 = vsel %vm86, %v27, 0
  %v100 = vsel %vm86, %v28, 0
  %v103 = vsel %vm86, %v29, 0
  %v106 = vsel %vm86, %v30, 0
  %v109 = vsel %vm86, %v31, 0
  %111 = vmatprep.subr.mxu0 0.0
  %112 = vmatpush1.msra.mxu0 0.0
  %113 = vmatprep.subr.mxu0 0.0
  %114 = vmatpush1.msra.mxu0 0.0
  %115 = vmatprep.subr.mxu0 0.0
  %116 = vmatpush1.msra.mxu0 0.0
  %117 = vmatprep.subr.mxu0 0.0
  %118 = vmatpush1.msra.mxu0 0.0
  %119 = vmatprep.subr.mxu0 0.0
  %120 = vmatpush1.msra.mxu0 0.0
  %121 = vmatprep.subr.mxu0 0.0
  %122 = vmatpush1.msra.mxu0 0.0
  %123 = vmatprep.subr.mxu0 0.0
  %124 = vmatpush1.msra.mxu0 0.0
  %125 = vmatprep.subr.mxu0 0.0
  %126 = vmatpush1.msra.mxu0 0.0
  %127 = vmatprep.subr.mxu0 %v61
  %128 = vmatpush1.msra.mxu0 %v60
  %129 = vmatprep.subr.mxu0 %v57
  %130 = vmatpush1.msra.mxu0 %v56
  %131 = vmatprep.subr.mxu0 %v53
  %132 = vmatpush1.msra.mxu0 %v52
  %133 = vmatprep.subr.mxu0 %v49
  %134 = vmatpush1.msra.mxu0 %v48
  %135 = vmatprep.subr.mxu0 %v45
  %136 = vmatpush1.msra.mxu0 %v44
  %137 = vmatprep.subr.mxu0 %v41
  %138 = vmatpush1.msra.mxu0 %v40
  %139 = vmatprep.subr.mxu0 %v37
  %140 = vmatpush1.msra.mxu0 %v36
  %141 = vmatprep.subr.mxu0 %v33
  %142 = vmatpush1.msra.mxu0 %v32
  %143 = vmatprep.subr.mxu0 0.0
  %144 = vmatpush2.msra.mxu0 0.0
  %145 = vmatprep.subr.mxu0 0.0
  %146 = vmatpush2.msra.mxu0 0.0
  %147 = vmatprep.subr.mxu0 0.0
  %148 = vmatpush2.msra.mxu0 0.0
  %149 = vmatprep.subr.mxu0 0.0
  %150 = vmatpush2.msra.mxu0 0.0
  %151 = vmatprep.subr.mxu0 0.0
  %152 = vmatpush2.msra.mxu0 0.0
  %153 = vmatprep.subr.mxu0 0.0
  %154 = vmatpush2.msra.mxu0 0.0
  %155 = vmatprep.subr.mxu0 0.0
  %156 = vmatpush2.msra.mxu0 0.0
  %157 = vmatprep.subr.mxu0 0.0
  %158 = vmatpush2.msra.mxu0 0.0
  %159 = vmatprep.subr.mxu0 0.0
  %160 = vmatpush2.msra.mxu0 0.0
  %161 = vmatprep.subr.mxu0 0.0
  %162 = vmatpush2.msra.mxu0 0.0
  %163 = vmatprep.subr.mxu0 0.0
  %164 = vmatpush2.msra.mxu0 0.0
  %165 = vmatprep.subr.mxu0 0.0
  %166 = vmatpush2.msra.mxu0 0.0
  %167 = vmatprep.subr.mxu0 0.0
  %168 = vmatpush2.msra.mxu0 0.0
  %169 = vmatprep.subr.mxu0 0.0
  %170 = vmatpush2.msra.mxu0 0.0
  %171 = vmatprep.subr.mxu0 0.0
  %172 = vmatpush2.msra.mxu0 0.0
  %173 = vmatprep.subr.mxu0 0.0
  %174 = vmatpush2.msra.mxu0 0.0
  %175 = vmatprep.mubr.f32.mxu0 0.0
  %176 = vmatmul.mubr.f32.gmra.mxu0 %v88
  %v177 = vpop.f32.mrf.mxu0
  %v178 = vadd.f32 %v69, %v177
  %v179 = vpop.f32.mrf.mxu0
  %v180 = vadd.f32 %v73, %v179
  %181 = vmatprep.mubr.f32.mxu0 0.0
  %182 = vmatmul.mubr.f32.gmra.mxu0 %v91
  %v183 = vpop.f32.mrf.mxu0
  %v184 = vadd.f32 %v69, %v183
  %v185 = vpop.f32.mrf.mxu0
  %v186 = vadd.f32 %v73, %v185
  %187 = vmatprep.mubr.f32.mxu0 0.0
  %188 = vmatmul.mubr.f32.gmra.mxu0 %v94
  %v189 = vpop.f32.mrf.mxu0
  %v190 = vadd.f32 %v69, %v189
  %v191 = vpop.f32.mrf.mxu0
  %v192 = vadd.f32 %v73, %v191
  %193 = vmatprep.mubr.f32.mxu0 0.0
  %194 = vmatmul.mubr.f32.gmra.mxu0 %v97
  %v195 = vpop.f32.mrf.mxu0
  %v196 = vadd.f32 %v69, %v195
  %v197 = vpop.f32.mrf.mxu0
  %v198 = vadd.f32 %v73, %v197
  %199 = vmatprep.mubr.f32.mxu0 0.0
  %200 = vmatmul.mubr.f32.gmra.mxu0 %v100
  %v201 = vpop.f32.mrf.mxu0
  %v202 = vadd.f32 %v69, %v201
  %v203 = vpop.f32.mrf.mxu0
  %v204 = vadd.f32 %v73, %v203
  %205 = vmatprep.mubr.f32.mxu0 0.0
  %206 = vmatmul.mubr.f32.gmra.mxu0 %v103
  %v207 = vpop.f32.mrf.mxu0
  %v208 = vadd.f32 %v69, %v207
  %v209 = vpop.f32.mrf.mxu0
  %v210 = vadd.f32 %v73, %v209
  %211 = vmatprep.mubr.f32.mxu0 0.0
  %212 = vmatmul.mubr.f32.gmra.mxu0 %v106
  %v213 = vpop.f32.mrf.mxu0
  %v214 = vadd.f32 %v69, %v213
  %v215 = vpop.f32.mrf.mxu0
  %v216 = vadd.f32 %v73, %v215
  %217 = vmatprep.mubr.f32.mxu0 0.0
  %218 = vmatmul.mubr.f32.gmra.mxu0 %v109
  %v219 = vpop.f32.mrf.mxu0
  %v220 = vadd.f32 %v69, %v219
  %v221 = vpop.f32.mrf.mxu0
  %v222 = vadd.f32 %v73, %v221
  %223 = vdwg.mxu0
  %224 = vmatprep.subr.mxu0 0.0
  %225 = vmatpush1.msra.mxu0 0.0
  %226 = vmatprep.subr.mxu0 0.0
  %227 = vmatpush1.msra.mxu0 0.0
  %228 = vmatprep.subr.mxu0 0.0
  %229 = vmatpush1.msra.mxu0 0.0
  %230 = vmatprep.subr.mxu0 0.0
  %231 = vmatpush1.msra.mxu0 0.0
  %232 = vmatprep.subr.mxu0 0.0
  %233 = vmatpush1.msra.mxu0 0.0
  %234 = vmatprep.subr.mxu0 0.0
  %235 = vmatpush1.msra.mxu0 0.0
  %236 = vmatprep.subr.mxu0 0.0
  %237 = vmatpush1.msra.mxu0 0.0
  %238 = vmatprep.subr.mxu0 0.0
  %239 = vmatpush1.msra.mxu0 0.0
  %240 = vmatprep.subr.mxu0 %v63
  %241 = vmatpush1.msra.mxu0 %v62
  %242 = vmatprep.subr.mxu0 %v59
  %243 = vmatpush1.msra.mxu0 %v58
  %244 = vmatprep.subr.mxu0 %v55
  %245 = vmatpush1.msra.mxu0 %v54
  %246 = vmatprep.subr.mxu0 %v51
  %247 = vmatpush1.msra.mxu0 %v50
  %248 = vmatprep.subr.mxu0 %v47
  %249 = vmatpush1.msra.mxu0 %v46
  %250 = vmatprep.subr.mxu0 %v43
  %251 = vmatpush1.msra.mxu0 %v42
  %252 = vmatprep.subr.mxu0 %v39
  %253 = vmatpush1.msra.mxu0 %v38
  %254 = vmatprep.subr.mxu0 %v35
  %255 = vmatpush1.msra.mxu0 %v34
  %256 = vmatprep.subr.mxu0 0.0
  %257 = vmatpush2.msra.mxu0 0.0
  %258 = vmatprep.subr.mxu0 0.0
  %259 = vmatpush2.msra.mxu0 0.0
  %260 = vmatprep.subr.mxu0 0.0
  %261 = vmatpush2.msra.mxu0 0.0
  %262 = vmatprep.subr.mxu0 0.0
  %263 = vmatpush2.msra.mxu0 0.0
  %264 = vmatprep.subr.mxu0 0.0
  %265 = vmatpush2.msra.mxu0 0.0
  %266 = vmatprep.subr.mxu0 0.0
  %267 = vmatpush2.msra.mxu0 0.0
  %268 = vmatprep.subr.mxu0 0.0
  %269 = vmatpush2.msra.mxu0 0.0
  %270 = vmatprep.subr.mxu0 0.0
  %271 = vmatpush2.msra.mxu0 0.0
  %272 = vmatprep.subr.mxu0 0.0
  %273 = vmatpush2.msra.mxu0 0.0
  %274 = vmatprep.subr.mxu0 0.0
  %275 = vmatpush2.msra.mxu0 0.0
  %276 = vmatprep.subr.mxu0 0.0
  %277 = vmatpush2.msra.mxu0 0.0
  %278 = vmatprep.subr.mxu0 0.0
  %279 = vmatpush2.msra.mxu0 0.0
  %280 = vmatprep.subr.mxu0 0.0
  %281 = vmatpush2.msra.mxu0 0.0
  %282 = vmatprep.subr.mxu0 0.0
  %283 = vmatpush2.msra.mxu0 0.0
  %284 = vmatprep.subr.mxu0 0.0
  %285 = vmatpush2.msra.mxu0 0.0
  %286 = vmatprep.subr.mxu0 0.0
  %287 = vmatpush2.msra.mxu0 0.0
  %288 = vmatprep.mubr.f32.mxu0 0.0
  %289 = vmatmul.mubr.f32.gmra.mxu0 %v88
  %v290 = vpop.f32.mrf.mxu0
  %v291 = vadd.f32 %v77, %v290
  %v292 = vpop.f32.mrf.mxu0
  %v293 = vadd.f32 %v81, %v292
  %294 = vmatprep.mubr.f32.mxu0 0.0
  %295 = vmatmul.mubr.f32.gmra.mxu0 %v91
  %v296 = vpop.f32.mrf.mxu0
  %v297 = vadd.f32 %v77, %v296
  %v298 = vpop.f32.mrf.mxu0
  %v299 = vadd.f32 %v81, %v298
  %300 = vmatprep.mubr.f32.mxu0 0.0
  %301 = vmatmul.mubr.f32.gmra.mxu0 %v94
  %v302 = vpop.f32.mrf.mxu0
  %v303 = vadd.f32 %v77, %v302
  %v304 = vpop.f32.mrf.mxu0
  %v305 = vadd.f32 %v81, %v304
  %306 = vmatprep.mubr.f32.mxu0 0.0
  %307 = vmatmul.mubr.f32.gmra.mxu0 %v97
  %v308 = vpop.f32.mrf.mxu0
  %v309 = vadd.f32 %v77, %v308
  %v310 = vpop.f32.mrf.mxu0
  %v311 = vadd.f32 %v81, %v310
  %312 = vmatprep.mubr.f32.mxu0 0.0
  %313 = vmatmul.mubr.f32.gmra.mxu0 %v100
  %v314 = vpop.f32.mrf.mxu0
  %v315 = vadd.f32 %v77, %v314
  %v316 = vpop.f32.mrf.mxu0
  %v317 = vadd.f32 %v81, %v316
  %318 = vmatprep.mubr.f32.mxu0 0.0
  %319 = vmatmul.mubr.f32.gmra.mxu0 %v103
  %v320 = vpop.f32.mrf.mxu0
  %v321 = vadd.f32 %v77, %v320
  %v322 = vpop.f32.mrf.mxu0
  %v323 = vadd.f32 %v81, %v322
  %324 = vmatprep.mubr.f32.mxu0 0.0
  %325 = vmatmul.mubr.f32.gmra.mxu0 %v106
  %v326 = vpop.f32.mrf.mxu0
  %v327 = vadd.f32 %v77, %v326
  %v328 = vpop.f32.mrf.mxu0
  %v329 = vadd.f32 %v81, %v328
  %330 = vmatprep.mubr.f32.mxu0 0.0
  %331 = vmatmul.mubr.f32.gmra.mxu0 %v109
  %v332 = vpop.f32.mrf.mxu0
  %v333 = vadd.f32 %v77, %v332
  %v334 = vpop.f32.mrf.mxu0
  %v335 = vadd.f32 %v81, %v334
  %336 = vdwg.mxu0
  %337 = vst [vmem:[#allocation3] sm:$0xff] %v178
  %338 = vst [vmem:[#allocation3 + $0x8] sm:$0xff] %v180
  %339 = vst [vmem:[#allocation3 + $0x10] sm:$0xff] %v291
  %340 = vst [vmem:[#allocation3 + $0x18] sm:$0xff] %v293
  %341 = vst [vmem:[#allocation3 + $0x20] sm:$0xff] %v184
  %342 = vst [vmem:[#allocation3 + $0x28] sm:$0xff] %v186
  %343 = vst [vmem:[#allocation3 + $0x30] sm:$0xff] %v297
  %344 = vst [vmem:[#allocation3 + $0x38] sm:$0xff] %v299
  %345 = vst [vmem:[#allocation3 + $0x40] sm:$0xff] %v190
  %346 = vst [vmem:[#allocation3 + $0x48] sm:$0xff] %v192
  %347 = vst [vmem:[#allocation3 + $0x50] sm:$0xff] %v303
  %348 = vst [vmem:[#allocation3 + $0x58] sm:$0xff] %v305
  %349 = vst [vmem:[#allocation3 + $0x60] sm:$0xff] %v196
  %350 = vst [vmem:[#allocation3 + $0x68] sm:$0xff] %v198
  %351 = vst [vmem:[#allocation3 + $0x70] sm:$0xff] %v309
  %352 = vst [vmem:[#allocation3 + $0x78] sm:$0xff] %v311
  %353 = vst [vmem:[#allocation3 + $0x80] sm:$0xff] %v202
  %354 = vst [vmem:[#allocation3 + $0x88] sm:$0xff] %v204
  %355 = vst [vmem:[#allocation3 + $0x90] sm:$0xff] %v315
  %356 = vst [vmem:[#allocation3 + $0x98] sm:$0xff] %v317
  %357 = vst [vmem:[#allocation3 + $0xa0] sm:$0xff] %v208
  %358 = vst [vmem:[#allocation3 + $0xa8] sm:$0xff] %v210
  %359 = vst [vmem:[#allocation3 + $0xb0] sm:$0xff] %v321
  %360 = vst [vmem:[#allocation3 + $0xb8] sm:$0xff] %v323
  %361 = vst [vmem:[#allocation3 + $0xc0] sm:$0xff] %v214
  %362 = vst [vmem:[#allocation3 + $0xc8] sm:$0xff] %v216
  %363 = vst [vmem:[#allocation3 + $0xd0] sm:$0xff] %v327
  %364 = vst [vmem:[#allocation3 + $0xd8] sm:$0xff] %v329
  %365 = vst [vmem:[#allocation3 + $0xe0] sm:$0xff] %v220
  %366 = vst [vmem:[#allocation3 + $0xe8] sm:$0xff] %v222
  %367 = vst [vmem:[#allocation3 + $0xf0] sm:$0xff] %v333
  %368 = vst [vmem:[#allocation3 + $0xf8] sm:$0xff] %v335
  %v369 = vld [vmem:[%s4] sm:$0xff]
  %v370 = vld [vmem:[#allocation2] sm:$0xff]
  %s371 = smul.u32 0, 4
  %s372 = smul.addr %s371, 8
  %s373 = scalar_lea.vmem [#allocation3], %s372
  %v374 = vld [vmem:[%s373] sm:$0xff]
  %v375 = vld [vmem:[%s373 + $0x8] sm:$0xff]
  %v376 = vld [vmem:[%s373 + $0x10] sm:$0xff]
  %v377 = vld [vmem:[%s373 + $0x18] sm:$0xff]
  %v378 = vpack.c.bf16 %v369, %v369
  %v379 = vld [vmem:[%s3] sm:$0xff]
  %v380 = vld [vmem:[%s3 + $0x8] sm:$0xff]
  %v381 = vld [vmem:[%s3 + $0x10] sm:$0xff]
  %v382 = vld [vmem:[%s3 + $0x18] sm:$0xff]
  %v383 = vld [vmem:[%s3 + $0x20] sm:$0xff]
  %v384 = vld [vmem:[%s3 + $0x28] sm:$0xff]
  %v385 = vld [vmem:[%s3 + $0x30] sm:$0xff]
  %v386 = vld [vmem:[%s3 + $0x38] sm:$0xff]
  %v387 = vld [vmem:[%s3 + $0x40] sm:$0xff]
  %v388 = vld [vmem:[%s3 + $0x48] sm:$0xff]
  %v389 = vld [vmem:[%s3 + $0x50] sm:$0xff]
  %v390 = vld [vmem:[%s3 + $0x58] sm:$0xff]
  %v391 = vld [vmem:[%s3 + $0x60] sm:$0xff]
  %v392 = vld [vmem:[%s3 + $0x68] sm:$0xff]
  %v393 = vld [vmem:[%s3 + $0x70] sm:$0xff]
  %v394 = vld [vmem:[%s3 + $0x78] sm:$0xff]
  %v395 = vld [vmem:[%s3 + $0x80] sm:$0xff]
  %v396 = vld [vmem:[%s3 + $0x88] sm:$0xff]
  %v397 = vld [vmem:[%s3 + $0x90] sm:$0xff]
  %v398 = vld [vmem:[%s3 + $0x98] sm:$0xff]
  %v399 = vld [vmem:[%s3 + $0xa0] sm:$0xff]
  %v400 = vld [vmem:[%s3 + $0xa8] sm:$0xff]
  %v401 = vld [vmem:[%s3 + $0xb0] sm:$0xff]
  %v402 = vld [vmem:[%s3 + $0xb8] sm:$0xff]
  %v403 = vld [vmem:[%s3 + $0xc0] sm:$0xff]
  %v404 = vld [vmem:[%s3 + $0xc8] sm:$0xff]
  %v405 = vld [vmem:[%s3 + $0xd0] sm:$0xff]
  %v406 = vld [vmem:[%s3 + $0xd8] sm:$0xff]
  %v407 = vld [vmem:[%s3 + $0xe0] sm:$0xff]
  %v408 = vld [vmem:[%s3 + $0xe8] sm:$0xff]
  %v409 = vld [vmem:[%s3 + $0xf0] sm:$0xff]
  %v410 = vld [vmem:[%s3 + $0xf8] sm:$0xff]
  %v443 = vunpack.c.l.b16 %v379
  %v444 = vunpack.c.h.b16 %v379
  %v445 = vunpack.c.l.b16 %v380
  %v446 = vunpack.c.h.b16 %v380
  %v447 = vunpack.c.l.b16 %v381
  %v448 = vunpack.c.h.b16 %v381
  %v449 = vunpack.c.l.b16 %v382
  %v450 = vunpack.c.h.b16 %v382
  %v451 = vunpack.c.l.b16 %v383
  %v452 = vunpack.c.h.b16 %v383
  %v453 = vunpack.c.l.b16 %v384
  %v454 = vunpack.c.h.b16 %v384
  %v455 = vunpack.c.l.b16 %v385
  %v456 = vunpack.c.h.b16 %v385
  %v457 = vunpack.c.l.b16 %v386
  %v458 = vunpack.c.h.b16 %v386
  %v459 = vunpack.c.l.b16 %v387
  %v460 = vunpack.c.h.b16 %v387
  %v461 = vunpack.c.l.b16 %v388
  %v462 = vunpack.c.h.b16 %v388
  %v463 = vunpack.c.l.b16 %v389
  %v464 = vunpack.c.h.b16 %v389
  %v465 = vunpack.c.l.b16 %v390
  %v466 = vunpack.c.h.b16 %v390
  %v467 = vunpack.c.l.b16 %v391
  %v468 = vunpack.c.h.b16 %v391
  %v469 = vunpack.c.l.b16 %v392
  %v470 = vunpack.c.h.b16 %v392
  %v471 = vunpack.c.l.b16 %v393
  %v472 = vunpack.c.h.b16 %v393
  %v473 = vunpack.c.l.b16 %v394
  %v474 = vunpack.c.h.b16 %v394
  %v475 = vunpack.c.l.b16 %v395
  %v476 = vunpack.c.h.b16 %v395
  %v477 = vunpack.c.l.b16 %v396
  %v478 = vunpack.c.h.b16 %v396
  %v479 = vunpack.c.l.b16 %v397
  %v480 = vunpack.c.h.b16 %v397
  %v481 = vunpack.c.l.b16 %v398
  %v482 = vunpack.c.h.b16 %v398
  %v483 = vunpack.c.l.b16 %v399
  %v484 = vunpack.c.h.b16 %v399
  %v485 = vunpack.c.l.b16 %v400
  %v486 = vunpack.c.h.b16 %v400
  %v487 = vunpack.c.l.b16 %v401
  %v488 = vunpack.c.h.b16 %v401
  %v489 = vunpack.c.l.b16 %v402
  %v490 = vunpack.c.h.b16 %v402
  %v491 = vunpack.c.l.b16 %v403
  %v492 = vunpack.c.h.b16 %v403
  %v493 = vunpack.c.l.b16 %v404
  %v494 = vunpack.c.h.b16 %v404
  %v495 = vunpack.c.l.b16 %v405
  %v496 = vunpack.c.h.b16 %v405
  %v497 = vunpack.c.l.b16 %v406
  %v498 = vunpack.c.h.b16 %v406
  %v499 = vunpack.c.l.b16 %v407
  %v500 = vunpack.c.h.b16 %v407
  %v501 = vunpack.c.l.b16 %v408
  %v502 = vunpack.c.h.b16 %v408
  %v503 = vunpack.c.l.b16 %v409
  %v504 = vunpack.c.h.b16 %v409
  %v505 = vunpack.c.l.b16 %v410
  %v506 = vunpack.c.h.b16 %v410
  %v507 = vpack.c.b16 %v447, %v443
  %v508 = vpack.c.b16 %v448, %v444
  %v509 = vpack.c.b16 %v449, %v445
  %v510 = vpack.c.b16 %v450, %v446
  %v511 = vpack.c.b16 %v455, %v451
  %v512 = vpack.c.b16 %v456, %v452
  %v513 = vpack.c.b16 %v457, %v453
  %v514 = vpack.c.b16 %v458, %v454
  %v515 = vpack.c.b16 %v463, %v459
  %v516 = vpack.c.b16 %v464, %v460
  %v517 = vpack.c.b16 %v465, %v461
  %v518 = vpack.c.b16 %v466, %v462
  %v519 = vpack.c.b16 %v471, %v467
  %v520 = vpack.c.b16 %v472, %v468
  %v521 = vpack.c.b16 %v473, %v469
  %v522 = vpack.c.b16 %v474, %v470
  %v523 = vpack.c.b16 %v479, %v475
  %v524 = vpack.c.b16 %v480, %v476
  %v525 = vpack.c.b16 %v481, %v477
  %v526 = vpack.c.b16 %v482, %v478
  %v527 = vpack.c.b16 %v487, %v483
  %v528 = vpack.c.b16 %v488, %v484
  %v529 = vpack.c.b16 %v489, %v485
  %v530 = vpack.c.b16 %v490, %v486
  %v531 = vpack.c.b16 %v495, %v491
  %v532 = vpack.c.b16 %v496, %v492
  %v533 = vpack.c.b16 %v497, %v493
  %v534 = vpack.c.b16 %v498, %v494
  %v535 = vpack.c.b16 %v503, %v499
  %v536 = vpack.c.b16 %v504, %v500
  %v537 = vpack.c.b16 %v505, %v501
  %v538 = vpack.c.b16 %v506, %v502
  %571 = vmatprep.subr.bf16.mxu0 %v536
  %572 = vmatpush1.bf16.msra.mxu0 %v535
  %573 = vmatprep.subr.bf16.mxu0 %v532
  %574 = vmatpush1.bf16.msra.mxu0 %v531
  %575 = vmatprep.subr.bf16.mxu0 %v528
  %576 = vmatpush1.bf16.msra.mxu0 %v527
  %577 = vmatprep.subr.bf16.mxu0 %v524
  %578 = vmatpush1.bf16.msra.mxu0 %v523
  %579 = vmatprep.subr.bf16.mxu0 %v520
  %580 = vmatpush1.bf16.msra.mxu0 %v519
  %581 = vmatprep.subr.bf16.mxu0 %v516
  %582 = vmatpush1.bf16.msra.mxu0 %v515
  %583 = vmatprep.subr.bf16.mxu0 %v512
  %584 = vmatpush1.bf16.msra.mxu0 %v511
  %585 = vmatprep.subr.bf16.mxu0 %v508
  %586 = vmatpush1.bf16.msra.mxu0 %v507
  %587 = vmatprep.subr.bf16.mxu0 0
  %588 = vmatpush2.bf16.msra.mxu0 0
  %589 = vmatprep.subr.bf16.mxu0 0
  %590 = vmatpush2.bf16.msra.mxu0 0
  %591 = vmatprep.subr.bf16.mxu0 0
  %592 = vmatpush2.bf16.msra.mxu0 0
  %593 = vmatprep.subr.bf16.mxu0 0
  %594 = vmatpush2.bf16.msra.mxu0 0
  %595 = vmatprep.subr.bf16.mxu0 0
  %596 = vmatpush2.bf16.msra.mxu0 0
  %597 = vmatprep.subr.bf16.mxu0 0
  %598 = vmatpush2.bf16.msra.mxu0 0
  %599 = vmatprep.subr.bf16.mxu0 0
  %600 = vmatpush2.bf16.msra.mxu0 0
  %601 = vmatprep.subr.bf16.mxu0 0
  %602 = vmatpush2.bf16.msra.mxu0 0
  %603 = vmatprep.mubr.bf16.mxu0 0
  %604 = vmatmul.mubr.bf16.gmra.mxu0 %v378
  %v605 = vpop.f32.mrf.mxu0
  %v606 = vadd.f32 0.0, %v605
  %v607 = vpop.f32.mrf.mxu0
  %v608 = vadd.f32 0.0, %v607
  %v609 = vpop.f32.mrf.mxu0
  %v610 = vpop.f32.mrf.mxu0
  %611 = vdwg.mxu0
  %612 = vmatprep.subr.bf16.mxu0 %v538
  %613 = vmatpush1.bf16.msra.mxu0 %v537
  %614 = vmatprep.subr.bf16.mxu0 %v534
  %615 = vmatpush1.bf16.msra.mxu0 %v533
  %616 = vmatprep.subr.bf16.mxu0 %v530
  %617 = vmatpush1.bf16.msra.mxu0 %v529
  %618 = vmatprep.subr.bf16.mxu0 %v526
  %619 = vmatpush1.bf16.msra.mxu0 %v525
  %620 = vmatprep.subr.bf16.mxu0 %v522
  %621 = vmatpush1.bf16.msra.mxu0 %v521
  %622 = vmatprep.subr.bf16.mxu0 %v518
  %623 = vmatpush1.bf16.msra.mxu0 %v517
  %624 = vmatprep.subr.bf16.mxu0 %v514
  %625 = vmatpush1.bf16.msra.mxu0 %v513
  %626 = vmatprep.subr.bf16.mxu0 %v510
  %627 = vmatpush1.bf16.msra.mxu0 %v509
  %628 = vmatprep.subr.bf16.mxu0 0
  %629 = vmatpush2.bf16.msra.mxu0 0
  %630 = vmatprep.subr.bf16.mxu0 0
  %631 = vmatpush2.bf16.msra.mxu0 0
  %632 = vmatprep.subr.bf16.mxu0 0
  %633 = vmatpush2.bf16.msra.mxu0 0
  %634 = vmatprep.subr.bf16.mxu0 0
  %635 = vmatpush2.bf16.msra.mxu0 0
  %636 = vmatprep.subr.bf16.mxu0 0
  %637 = vmatpush2.bf16.msra.mxu0 0
  %638 = vmatprep.subr.bf16.mxu0 0
  %639 = vmatpush2.bf16.msra.mxu0 0
  %640 = vmatprep.subr.bf16.mxu0 0
  %641 = vmatpush2.bf16.msra.mxu0 0
  %642 = vmatprep.subr.bf16.mxu0 0
  %643 = vmatpush2.bf16.msra.mxu0 0
  %644 = vmatprep.mubr.bf16.mxu0 0
  %645 = vmatmul.mubr.bf16.gmra.mxu0 %v378
  %v646 = vpop.f32.mrf.mxu0
  %v647 = vadd.f32 0.0, %v646
  %v648 = vpop.f32.mrf.mxu0
  %v649 = vadd.f32 0.0, %v648
  %v650 = vpop.f32.mrf.mxu0
  %v651 = vpop.f32.mrf.mxu0
  %652 = vdwg.mxu0
  %v653 = vadd.f32 %v374, %v606
  %v654 = vadd.f32 %v375, %v608
  %v655 = vadd.f32 %v376, %v647
  %v656 = vadd.f32 %v377, %v649
  %v657 = vmul.f32 %v653, 0.5
  %v658 = vtanh.pop %v657
  %v659 = vmul.f32 %v658, 0.5
  %v660 = vadd.f32 %v659, 0.5
  %v661 = vmul.f32 %v654, 0.5
  %v662 = vtanh.pop %v661
  %v663 = vmul.f32 %v662, 0.5
  %v664 = vadd.f32 %v663, 0.5
  %v665 = vtanh.pop %v655
  %v666 = vmul.f32 %v656, 0.5
  %v667 = vtanh.pop %v666
  %v668 = vmul.f32 %v667, 0.5
  %v669 = vadd.f32 %v668, 0.5
  %v670 = vmul.f32 %v664, %v370
  %v671 = vmul.f32 %v660, %v665
  %v672 = vadd.f32 %v670, %v671
  %v673 = vtanh.pop %v672
  %v674 = vmul.f32 %v669, %v673
  %s675 = smul.u32 1, 4
  %s676 = smul.addr %s675, 8
  %s677 = scalar_lea.vmem [#allocation3], %s676
  %v678 = vld [vmem:[%s677] sm:$0xff]
  %v679 = vld [vmem:[%s677 + $0x8] sm:$0xff]
  %v680 = vld [vmem:[%s677 + $0x10] sm:$0xff]
  %v681 = vld [vmem:[%s677 + $0x18] sm:$0xff]
  %v682 = vpack.c.bf16 %v674, %v674
  %683 = vmatprep.subr.bf16.mxu0 %v536
  %684 = vmatpush1.bf16.msra.mxu0 %v535
  %685 = vmatprep.subr.bf16.mxu0 %v532
  %686 = vmatpush1.bf16.msra.mxu0 %v531
  %687 = vmatprep.subr.bf16.mxu0 %v528
  %688 = vmatpush1.bf16.msra.mxu0 %v527
  %689 = vmatprep.subr.bf16.mxu0 %v524
  %690 = vmatpush1.bf16.msra.mxu0 %v523
  %691 = vmatprep.subr.bf16.mxu0 %v520
  %692 = vmatpush1.bf16.msra.mxu0 %v519
  %693 = vmatprep.subr.bf16.mxu0 %v516
  %694 = vmatpush1.bf16.msra.mxu0 %v515
  %695 = vmatprep.subr.bf16.mxu0 %v512
  %696 = vmatpush1.bf16.msra.mxu0 %v511
  %697 = vmatprep.subr.bf16.mxu0 %v508
  %698 = vmatpush1.bf16.msra.mxu0 %v507
  %699 = vmatprep.subr.bf16.mxu0 0
  %700 = vmatpush2.bf16.msra.mxu0 0
  %701 = vmatprep.subr.bf16.mxu0 0
  %702 = vmatpush2.bf16.msra.mxu0 0
  %703 = vmatprep.subr.bf16.mxu0 0
  %704 = vmatpush2.bf16.msra.mxu0 0
  %705 = vmatprep.subr.bf16.mxu0 0
  %706 = vmatpush2.bf16.msra.mxu0 0
  %707 = vmatprep.subr.bf16.mxu0 0
  %708 = vmatpush2.bf16.msra.mxu0 0
  %709 = vmatprep.subr.bf16.mxu0 0
  %710 = vmatpush2.bf16.msra.mxu0 0
  %711 = vmatprep.subr.bf16.mxu0 0
  %712 = vmatpush2.bf16.msra.mxu0 0
  %713 = vmatprep.subr.bf16.mxu0 0
  %714 = vmatpush2.bf16.msra.mxu0 0
  %715 = vmatprep.mubr.bf16.mxu0 0
  %716 = vmatmul.mubr.bf16.gmra.mxu0 %v682
  %v717 = vpop.f32.mrf.mxu0
  %v718 = vadd.f32 0.0, %v717
  %v719 = vpop.f32.mrf.mxu0
  %v720 = vadd.f32 0.0, %v719
  %v721 = vpop.f32.mrf.mxu0
  %v722 = vpop.f32.mrf.mxu0
  %723 = vdwg.mxu0
  %724 = vmatprep.subr.bf16.mxu0 %v538
  %725 = vmatpush1.bf16.msra.mxu0 %v537
  %726 = vmatprep.subr.bf16.mxu0 %v534
  %727 = vmatpush1.bf16.msra.mxu0 %v533
  %728 = vmatprep.subr.bf16.mxu0 %v530
  %729 = vmatpush1.bf16.msra.mxu0 %v529
  %730 = vmatprep.subr.bf16.mxu0 %v526
  %731 = vmatpush1.bf16.msra.mxu0 %v525
  %732 = vmatprep.subr.bf16.mxu0 %v522
  %733 = vmatpush1.bf16.msra.mxu0 %v521
  %734 = vmatprep.subr.bf16.mxu0 %v518
  %735 = vmatpush1.bf16.msra.mxu0 %v517
  %736 = vmatprep.subr.bf16.mxu0 %v514
  %737 = vmatpush1.bf16.msra.mxu0 %v513
  %738 = vmatprep.subr.bf16.mxu0 %v510
  %739 = vmatpush1.bf16.msra.mxu0 %v509
  %740 = vmatprep.subr.bf16.mxu0 0
  %741 = vmatpush2.bf16.msra.mxu0 0
  %742 = vmatprep.subr.bf16.mxu0 0
  %743 = vmatpush2.bf16.msra.mxu0 0
  %744 = vmatprep.subr.bf16.mxu0 0
  %745 = vmatpush2.bf16.msra.mxu0 0
  %746 = vmatprep.subr.bf16.mxu0 0
  %747 = vmatpush2.bf16.msra.mxu0 0
  %748 = vmatprep.subr.bf16.mxu0 0
  %749 = vmatpush2.bf16.msra.mxu0 0
  %750 = vmatprep.subr.bf16.mxu0 0
  %751 = vmatpush2.bf16.msra.mxu0 0
  %752 = vmatprep.subr.bf16.mxu0 0
  %753 = vmatpush2.bf16.msra.mxu0 0
  %754 = vmatprep.subr.bf16.mxu0 0
  %755 = vmatpush2.bf16.msra.mxu0 0
  %756 = vmatprep.mubr.bf16.mxu0 0
  %757 = vmatmul.mubr.bf16.gmra.mxu0 %v682
  %v758 = vpop.f32.mrf.mxu0
  %v759 = vadd.f32 0.0, %v758
  %v760 = vpop.f32.mrf.mxu0
  %v761 = vadd.f32 0.0, %v760
  %v762 = vpop.f32.mrf.mxu0
  %v763 = vpop.f32.mrf.mxu0
  %764 = vdwg.mxu0
  %v765 = vadd.f32 %v678, %v718
  %v766 = vadd.f32 %v679, %v720
  %v767 = vadd.f32 %v680, %v759
  %v768 = vadd.f32 %v681, %v761
  %v769 = vmul.f32 %v765, 0.5
  %v770 = vtanh.pop %v769
  %v771 = vmul.f32 %v770, 0.5
  %v772 = vadd.f32 %v771, 0.5
  %v773 = vmul.f32 %v766, 0.5
  %v774 = vtanh.pop %v773
  %v775 = vmul.f32 %v774, 0.5
  %v776 = vadd.f32 %v775, 0.5
  %v777 = vtanh.pop %v767
  %v778 = vmul.f32 %v768, 0.5
  %v779 = vtanh.pop %v778
  %v780 = vmul.f32 %v779, 0.5
  %v781 = vadd.f32 %v780, 0.5
  %v782 = vmul.f32 %v776, %v672
  %v783 = vmul.f32 %v772, %v777
  %v784 = vadd.f32 %v782, %v783
  %v785 = vtanh.pop %v784
  %v786 = vmul.f32 %v781, %v785
  %s787 = smul.u32 2, 4
  %s788 = smul.addr %s787, 8
  %s789 = scalar_lea.vmem [#allocation3], %s788
  %v790 = vld [vmem:[%s789] sm:$0xff]
  %v791 = vld [vmem:[%s789 + $0x8] sm:$0xff]
  %v792 = vld [vmem:[%s789 + $0x10] sm:$0xff]
  %v793 = vld [vmem:[%s789 + $0x18] sm:$0xff]
  %v794 = vpack.c.bf16 %v786, %v786
  %795 = vmatprep.subr.bf16.mxu0 %v536
  %796 = vmatpush1.bf16.msra.mxu0 %v535
  %797 = vmatprep.subr.bf16.mxu0 %v532
  %798 = vmatpush1.bf16.msra.mxu0 %v531
  %799 = vmatprep.subr.bf16.mxu0 %v528
  %800 = vmatpush1.bf16.msra.mxu0 %v527
  %801 = vmatprep.subr.bf16.mxu0 %v524
  %802 = vmatpush1.bf16.msra.mxu0 %v523
  %803 = vmatprep.subr.bf16.mxu0 %v520
  %804 = vmatpush1.bf16.msra.mxu0 %v519
  %805 = vmatprep.subr.bf16.mxu0 %v516
  %806 = vmatpush1.bf16.msra.mxu0 %v515
  %807 = vmatprep.subr.bf16.mxu0 %v512
  %808 = vmatpush1.bf16.msra.mxu0 %v511
  %809 = vmatprep.subr.bf16.mxu0 %v508
  %810 = vmatpush1.bf16.msra.mxu0 %v507
  %811 = vmatprep.subr.bf16.mxu0 0
  %812 = vmatpush2.bf16.msra.mxu0 0
  %813 = vmatprep.subr.bf16.mxu0 0
  %814 = vmatpush2.bf16.msra.mxu0 0
  %815 = vmatprep.subr.bf16.mxu0 0
  %816 = vmatpush2.bf16.msra.mxu0 0
  %817 = vmatprep.subr.bf16.mxu0 0
  %818 = vmatpush2.bf16.msra.mxu0 0
  %819 = vmatprep.subr.bf16.mxu0 0
  %820 = vmatpush2.bf16.msra.mxu0 0
  %821 = vmatprep.subr.bf16.mxu0 0
  %822 = vmatpush2.bf16.msra.mxu0 0
  %823 = vmatprep.subr.bf16.mxu0 0
  %824 = vmatpush2.bf16.msra.mxu0 0
  %825 = vmatprep.subr.bf16.mxu0 0
  %826 = vmatpush2.bf16.msra.mxu0 0
  %827 = vmatprep.mubr.bf16.mxu0 0
  %828 = vmatmul.mubr.bf16.gmra.mxu0 %v794
  %v829 = vpop.f32.mrf.mxu0
  %v830 = vadd.f32 0.0, %v829
  %v831 = vpop.f32.mrf.mxu0
  %v832 = vadd.f32 0.0, %v831
  %v833 = vpop.f32.mrf.mxu0
  %v834 = vpop.f32.mrf.mxu0
  %835 = vdwg.mxu0
  %836 = vmatprep.subr.bf16.mxu0 %v538
  %837 = vmatpush1.bf16.msra.mxu0 %v537
  %838 = vmatprep.subr.bf16.mxu0 %v534
  %839 = vmatpush1.bf16.msra.mxu0 %v533
  %840 = vmatprep.subr.bf16.mxu0 %v530
  %841 = vmatpush1.bf16.msra.mxu0 %v529
  %842 = vmatprep.subr.bf16.mxu0 %v526
  %843 = vmatpush1.bf16.msra.mxu0 %v525
  %844 = vmatprep.subr.bf16.mxu0 %v522
  %845 = vmatpush1.bf16.msra.mxu0 %v521
  %846 = vmatprep.subr.bf16.mxu0 %v518
  %847 = vmatpush1.bf16.msra.mxu0 %v517
  %848 = vmatprep.subr.bf16.mxu0 %v514
  %849 = vmatpush1.bf16.msra.mxu0 %v513
  %850 = vmatprep.subr.bf16.mxu0 %v510
  %851 = vmatpush1.bf16.msra.mxu0 %v509
  %852 = vmatprep.subr.bf16.mxu0 0
  %853 = vmatpush2.bf16.msra.mxu0 0
  %854 = vmatprep.subr.bf16.mxu0 0
  %855 = vmatpush2.bf16.msra.mxu0 0
  %856 = vmatprep.subr.bf16.mxu0 0
  %857 = vmatpush2.bf16.msra.mxu0 0
  %858 = vmatprep.subr.bf16.mxu0 0
  %859 = vmatpush2.bf16.msra.mxu0 0
  %860 = vmatprep.subr.bf16.mxu0 0
  %861 = vmatpush2.bf16.msra.mxu0 0
  %862 = vmatprep.subr.bf16.mxu0 0
  %863 = vmatpush2.bf16.msra.mxu0 0
  %864 = vmatprep.subr.bf16.mxu0 0
  %865 = vmatpush2.bf16.msra.mxu0 0
  %866 = vmatprep.subr.bf16.mxu0 0
  %867 = vmatpush2.bf16.msra.mxu0 0
  %868 = vmatprep.mubr.bf16.mxu0 0
  %869 = vmatmul.mubr.bf16.gmra.mxu0 %v794
  %v870 = vpop.f32.mrf.mxu0
  %v871 = vadd.f32 0.0, %v870
  %v872 = vpop.f32.mrf.mxu0
  %v873 = vadd.f32 0.0, %v872
  %v874 = vpop.f32.mrf.mxu0
  %v875 = vpop.f32.mrf.mxu0
  %876 = vdwg.mxu0
  %v877 = vadd.f32 %v790, %v830
  %v878 = vadd.f32 %v791, %v832
  %v879 = vadd.f32 %v792, %v871
  %v880 = vadd.f32 %v793, %v873
  %v881 = vmul.f32 %v877, 0.5
  %v882 = vtanh.pop %v881
  %v883 = vmul.f32 %v882, 0.5
  %v884 = vadd.f32 %v883, 0.5
  %v885 = vmul.f32 %v878, 0.5
  %v886 = vtanh.pop %v885
  %v887 = vmul.f32 %v886, 0.5
  %v888 = vadd.f32 %v887, 0.5
  %v889 = vtanh.pop %v879
  %v890 = vmul.f32 %v880, 0.5
  %v891 = vtanh.pop %v890
  %v892 = vmul.f32 %v891, 0.5
  %v893 = vadd.f32 %v892, 0.5
  %v894 = vmul.f32 %v888, %v784
  %v895 = vmul.f32 %v884, %v889
  %v896 = vadd.f32 %v894, %v895
  %v897 = vtanh.pop %v896
  %v898 = vmul.f32 %v893, %v897
  %s899 = smul.u32 3, 4
  %s900 = smul.addr %s899, 8
  %s901 = scalar_lea.vmem [#allocation3], %s900
  %v902 = vld [vmem:[%s901] sm:$0xff]
  %v903 = vld [vmem:[%s901 + $0x8] sm:$0xff]
  %v904 = vld [vmem:[%s901 + $0x10] sm:$0xff]
  %v905 = vld [vmem:[%s901 + $0x18] sm:$0xff]
  %v906 = vpack.c.bf16 %v898, %v898
  %907 = vmatprep.subr.bf16.mxu0 %v536
  %908 = vmatpush1.bf16.msra.mxu0 %v535
  %909 = vmatprep.subr.bf16.mxu0 %v532
  %910 = vmatpush1.bf16.msra.mxu0 %v531
  %911 = vmatprep.subr.bf16.mxu0 %v528
  %912 = vmatpush1.bf16.msra.mxu0 %v527
  %913 = vmatprep.subr.bf16.mxu0 %v524
  %914 = vmatpush1.bf16.msra.mxu0 %v523
  %915 = vmatprep.subr.bf16.mxu0 %v520
  %916 = vmatpush1.bf16.msra.mxu0 %v519
  %917 = vmatprep.subr.bf16.mxu0 %v516
  %918 = vmatpush1.bf16.msra.mxu0 %v515
  %919 = vmatprep.subr.bf16.mxu0 %v512
  %920 = vmatpush1.bf16.msra.mxu0 %v511
  %921 = vmatprep.subr.bf16.mxu0 %v508
  %922 = vmatpush1.bf16.msra.mxu0 %v507
  %923 = vmatprep.subr.bf16.mxu0 0
  %924 = vmatpush2.bf16.msra.mxu0 0
  %925 = vmatprep.subr.bf16.mxu0 0
  %926 = vmatpush2.bf16.msra.mxu0 0
  %927 = vmatprep.subr.bf16.mxu0 0
  %928 = vmatpush2.bf16.msra.mxu0 0
  %929 = vmatprep.subr.bf16.mxu0 0
  %930 = vmatpush2.bf16.msra.mxu0 0
  %931 = vmatprep.subr.bf16.mxu0 0
  %932 = vmatpush2.bf16.msra.mxu0 0
  %933 = vmatprep.subr.bf16.mxu0 0
  %934 = vmatpush2.bf16.msra.mxu0 0
  %935 = vmatprep.subr.bf16.mxu0 0
  %936 = vmatpush2.bf16.msra.mxu0 0
  %937 = vmatprep.subr.bf16.mxu0 0
  %938 = vmatpush2.bf16.msra.mxu0 0
  %939 = vmatprep.mubr.bf16.mxu0 0
  %940 = vmatmul.mubr.bf16.gmra.mxu0 %v906
  %v941 = vpop.f32.mrf.mxu0
  %v942 = vadd.f32 0.0, %v941
  %v943 = vpop.f32.mrf.mxu0
  %v944 = vadd.f32 0.0, %v943
  %v945 = vpop.f32.mrf.mxu0
  %v946 = vpop.f32.mrf.mxu0
  %947 = vdwg.mxu0
  %948 = vmatprep.subr.bf16.mxu0 %v538
  %949 = vmatpush1.bf16.msra.mxu0 %v537
  %950 = vmatprep.subr.bf16.mxu0 %v534
  %951 = vmatpush1.bf16.msra.mxu0 %v533
  %952 = vmatprep.subr.bf16.mxu0 %v530
  %953 = vmatpush1.bf16.msra.mxu0 %v529
  %954 = vmatprep.subr.bf16.mxu0 %v526
  %955 = vmatpush1.bf16.msra.mxu0 %v525
  %956 = vmatprep.subr.bf16.mxu0 %v522
  %957 = vmatpush1.bf16.msra.mxu0 %v521
  %958 = vmatprep.subr.bf16.mxu0 %v518
  %959 = vmatpush1.bf16.msra.mxu0 %v517
  %960 = vmatprep.subr.bf16.mxu0 %v514
  %961 = vmatpush1.bf16.msra.mxu0 %v513
  %962 = vmatprep.subr.bf16.mxu0 %v510
  %963 = vmatpush1.bf16.msra.mxu0 %v509
  %964 = vmatprep.subr.bf16.mxu0 0
  %965 = vmatpush2.bf16.msra.mxu0 0
  %966 = vmatprep.subr.bf16.mxu0 0
  %967 = vmatpush2.bf16.msra.mxu0 0
  %968 = vmatprep.subr.bf16.mxu0 0
  %969 = vmatpush2.bf16.msra.mxu0 0
  %970 = vmatprep.subr.bf16.mxu0 0
  %971 = vmatpush2.bf16.msra.mxu0 0
  %972 = vmatprep.subr.bf16.mxu0 0
  %973 = vmatpush2.bf16.msra.mxu0 0
  %974 = vmatprep.subr.bf16.mxu0 0
  %975 = vmatpush2.bf16.msra.mxu0 0
  %976 = vmatprep.subr.bf16.mxu0 0
  %977 = vmatpush2.bf16.msra.mxu0 0
  %978 = vmatprep.subr.bf16.mxu0 0
  %979 = vmatpush2.bf16.msra.mxu0 0
  %980 = vmatprep.mubr.bf16.mxu0 0
  %981 = vmatmul.mubr.bf16.gmra.mxu0 %v906
  %v982 = vpop.f32.mrf.mxu0
  %v983 = vadd.f32 0.0, %v982
  %v984 = vpop.f32.mrf.mxu0
  %v985 = vadd.f32 0.0, %v984
  %v986 = vpop.f32.mrf.mxu0
  %v987 = vpop.f32.mrf.mxu0
  %988 = vdwg.mxu0
  %v989 = vadd.f32 %v902, %v942
  %v990 = vadd.f32 %v903, %v944
  %v991 = vadd.f32 %v904, %v983
  %v992 = vadd.f32 %v905, %v985
  %v993 = vmul.f32 %v989, 0.5
  %v994 = vtanh.pop %v993
  %v995 = vmul.f32 %v994, 0.5
  %v996 = vadd.f32 %v995, 0.5
  %v997 = vmul.f32 %v990, 0.5
  %v998 = vtanh.pop %v997
  %v999 = vmul.f32 %v998, 0.5
  %v1000 = vadd.f32 %v999, 0.5
  %v1001 = vtanh.pop %v991
  %v1002 = vmul.f32 %v992, 0.5
  %v1003 = vtanh.pop %v1002
  %v1004 = vmul.f32 %v1003, 0.5
  %v1005 = vadd.f32 %v1004, 0.5
  %v1006 = vmul.f32 %v1000, %v896
  %v1007 = vmul.f32 %v996, %v1001
  %v1008 = vadd.f32 %v1006, %v1007
  %v1009 = vtanh.pop %v1008
  %v1010 = vmul.f32 %v1005, %v1009
  %s1011 = smul.u32 4, 4
  %s1012 = smul.addr %s1011, 8
  %s1013 = scalar_lea.vmem [#allocation3], %s1012
  %v1014 = vld [vmem:[%s1013] sm:$0xff]
  %v1015 = vld [vmem:[%s1013 + $0x8] sm:$0xff]
  %v1016 = vld [vmem:[%s1013 + $0x10] sm:$0xff]
  %v1017 = vld [vmem:[%s1013 + $0x18] sm:$0xff]
  %v1018 = vpack.c.bf16 %v1010, %v1010
  %1019 = vmatprep.subr.bf16.mxu0 %v536
  %1020 = vmatpush1.bf16.msra.mxu0 %v535
  %1021 = vmatprep.subr.bf16.mxu0 %v532
  %1022 = vmatpush1.bf16.msra.mxu0 %v531
  %1023 = vmatprep.subr.bf16.mxu0 %v528
  %1024 = vmatpush1.bf16.msra.mxu0 %v527
  %1025 = vmatprep.subr.bf16.mxu0 %v524
  %1026 = vmatpush1.bf16.msra.mxu0 %v523
  %1027 = vmatprep.subr.bf16.mxu0 %v520
  %1028 = vmatpush1.bf16.msra.mxu0 %v519
  %1029 = vmatprep.subr.bf16.mxu0 %v516
  %1030 = vmatpush1.bf16.msra.mxu0 %v515
  %1031 = vmatprep.subr.bf16.mxu0 %v512
  %1032 = vmatpush1.bf16.msra.mxu0 %v511
  %1033 = vmatprep.subr.bf16.mxu0 %v508
  %1034 = vmatpush1.bf16.msra.mxu0 %v507
  %1035 = vmatprep.subr.bf16.mxu0 0
  %1036 = vmatpush2.bf16.msra.mxu0 0
  %1037 = vmatprep.subr.bf16.mxu0 0
  %1038 = vmatpush2.bf16.msra.mxu0 0
  %1039 = vmatprep.subr.bf16.mxu0 0
  %1040 = vmatpush2.bf16.msra.mxu0 0
  %1041 = vmatprep.subr.bf16.mxu0 0
  %1042 = vmatpush2.bf16.msra.mxu0 0
  %1043 = vmatprep.subr.bf16.mxu0 0
  %1044 = vmatpush2.bf16.msra.mxu0 0
  %1045 = vmatprep.subr.bf16.mxu0 0
  %1046 = vmatpush2.bf16.msra.mxu0 0
  %1047 = vmatprep.subr.bf16.mxu0 0
  %1048 = vmatpush2.bf16.msra.mxu0 0
  %1049 = vmatprep.subr.bf16.mxu0 0
  %1050 = vmatpush2.bf16.msra.mxu0 0
  %1051 = vmatprep.mubr.bf16.mxu0 0
  %1052 = vmatmul.mubr.bf16.gmra.mxu0 %v1018
  %v1053 = vpop.f32.mrf.mxu0
  %v1054 = vadd.f32 0.0, %v1053
  %v1055 = vpop.f32.mrf.mxu0
  %v1056 = vadd.f32 0.0, %v1055
  %v1057 = vpop.f32.mrf.mxu0
  %v1058 = vpop.f32.mrf.mxu0
  %1059 = vdwg.mxu0
  %1060 = vmatprep.subr.bf16.mxu0 %v538
  %1061 = vmatpush1.bf16.msra.mxu0 %v537
  %1062 = vmatprep.subr.bf16.mxu0 %v534
  %1063 = vmatpush1.bf16.msra.mxu0 %v533
  %1064 = vmatprep.subr.bf16.mxu0 %v530
  %1065 = vmatpush1.bf16.msra.mxu0 %v529
  %1066 = vmatprep.subr.bf16.mxu0 %v526
  %1067 = vmatpush1.bf16.msra.mxu0 %v525
  %1068 = vmatprep.subr.bf16.mxu0 %v522
  %1069 = vmatpush1.bf16.msra.mxu0 %v521
  %1070 = vmatprep.subr.bf16.mxu0 %v518
  %1071 = vmatpush1.bf16.msra.mxu0 %v517
  %1072 = vmatprep.subr.bf16.mxu0 %v514
  %1073 = vmatpush1.bf16.msra.mxu0 %v513
  %1074 = vmatprep.subr.bf16.mxu0 %v510
  %1075 = vmatpush1.bf16.msra.mxu0 %v509
  %1076 = vmatprep.subr.bf16.mxu0 0
  %1077 = vmatpush2.bf16.msra.mxu0 0
  %1078 = vmatprep.subr.bf16.mxu0 0
  %1079 = vmatpush2.bf16.msra.mxu0 0
  %1080 = vmatprep.subr.bf16.mxu0 0
  %1081 = vmatpush2.bf16.msra.mxu0 0
  %1082 = vmatprep.subr.bf16.mxu0 0
  %1083 = vmatpush2.bf16.msra.mxu0 0
  %1084 = vmatprep.subr.bf16.mxu0 0
  %1085 = vmatpush2.bf16.msra.mxu0 0
  %1086 = vmatprep.subr.bf16.mxu0 0
  %1087 = vmatpush2.bf16.msra.mxu0 0
  %1088 = vmatprep.subr.bf16.mxu0 0
  %1089 = vmatpush2.bf16.msra.mxu0 0
  %1090 = vmatprep.subr.bf16.mxu0 0
  %1091 = vmatpush2.bf16.msra.mxu0 0
  %1092 = vmatprep.mubr.bf16.mxu0 0
  %1093 = vmatmul.mubr.bf16.gmra.mxu0 %v1018
  %v1094 = vpop.f32.mrf.mxu0
  %v1095 = vadd.f32 0.0, %v1094
  %v1096 = vpop.f32.mrf.mxu0
  %v1097 = vadd.f32 0.0, %v1096
  %v1098 = vpop.f32.mrf.mxu0
  %v1099 = vpop.f32.mrf.mxu0
  %1100 = vdwg.mxu0
  %v1101 = vadd.f32 %v1014, %v1054
  %v1102 = vadd.f32 %v1015, %v1056
  %v1103 = vadd.f32 %v1016, %v1095
  %v1104 = vadd.f32 %v1017, %v1097
  %v1105 = vmul.f32 %v1101, 0.5
  %v1106 = vtanh.pop %v1105
  %v1107 = vmul.f32 %v1106, 0.5
  %v1108 = vadd.f32 %v1107, 0.5
  %v1109 = vmul.f32 %v1102, 0.5
  %v1110 = vtanh.pop %v1109
  %v1111 = vmul.f32 %v1110, 0.5
  %v1112 = vadd.f32 %v1111, 0.5
  %v1113 = vtanh.pop %v1103
  %v1114 = vmul.f32 %v1104, 0.5
  %v1115 = vtanh.pop %v1114
  %v1116 = vmul.f32 %v1115, 0.5
  %v1117 = vadd.f32 %v1116, 0.5
  %v1118 = vmul.f32 %v1112, %v1008
  %v1119 = vmul.f32 %v1108, %v1113
  %v1120 = vadd.f32 %v1118, %v1119
  %v1121 = vtanh.pop %v1120
  %v1122 = vmul.f32 %v1117, %v1121
  %s1123 = smul.u32 5, 4
  %s1124 = smul.addr %s1123, 8
  %s1125 = scalar_lea.vmem [#allocation3], %s1124
  %v1126 = vld [vmem:[%s1125] sm:$0xff]
  %v1127 = vld [vmem:[%s1125 + $0x8] sm:$0xff]
  %v1128 = vld [vmem:[%s1125 + $0x10] sm:$0xff]
  %v1129 = vld [vmem:[%s1125 + $0x18] sm:$0xff]
  %v1130 = vpack.c.bf16 %v1122, %v1122
  %1131 = vmatprep.subr.bf16.mxu0 %v536
  %1132 = vmatpush1.bf16.msra.mxu0 %v535
  %1133 = vmatprep.subr.bf16.mxu0 %v532
  %1134 = vmatpush1.bf16.msra.mxu0 %v531
  %1135 = vmatprep.subr.bf16.mxu0 %v528
  %1136 = vmatpush1.bf16.msra.mxu0 %v527
  %1137 = vmatprep.subr.bf16.mxu0 %v524
  %1138 = vmatpush1.bf16.msra.mxu0 %v523
  %1139 = vmatprep.subr.bf16.mxu0 %v520
  %1140 = vmatpush1.bf16.msra.mxu0 %v519
  %1141 = vmatprep.subr.bf16.mxu0 %v516
  %1142 = vmatpush1.bf16.msra.mxu0 %v515
  %1143 = vmatprep.subr.bf16.mxu0 %v512
  %1144 = vmatpush1.bf16.msra.mxu0 %v511
  %1145 = vmatprep.subr.bf16.mxu0 %v508
  %1146 = vmatpush1.bf16.msra.mxu0 %v507
  %1147 = vmatprep.subr.bf16.mxu0 0
  %1148 = vmatpush2.bf16.msra.mxu0 0
  %1149 = vmatprep.subr.bf16.mxu0 0
  %1150 = vmatpush2.bf16.msra.mxu0 0
  %1151 = vmatprep.subr.bf16.mxu0 0
  %1152 = vmatpush2.bf16.msra.mxu0 0
  %1153 = vmatprep.subr.bf16.mxu0 0
  %1154 = vmatpush2.bf16.msra.mxu0 0
  %1155 = vmatprep.subr.bf16.mxu0 0
  %1156 = vmatpush2.bf16.msra.mxu0 0
  %1157 = vmatprep.subr.bf16.mxu0 0
  %1158 = vmatpush2.bf16.msra.mxu0 0
  %1159 = vmatprep.subr.bf16.mxu0 0
  %1160 = vmatpush2.bf16.msra.mxu0 0
  %1161 = vmatprep.subr.bf16.mxu0 0
  %1162 = vmatpush2.bf16.msra.mxu0 0
  %1163 = vmatprep.mubr.bf16.mxu0 0
  %1164 = vmatmul.mubr.bf16.gmra.mxu0 %v1130
  %v1165 = vpop.f32.mrf.mxu0
  %v1166 = vadd.f32 0.0, %v1165
  %v1167 = vpop.f32.mrf.mxu0
  %v1168 = vadd.f32 0.0, %v1167
  %v1169 = vpop.f32.mrf.mxu0
  %v1170 = vpop.f32.mrf.mxu0
  %1171 = vdwg.mxu0
  %1172 = vmatprep.subr.bf16.mxu0 %v538
  %1173 = vmatpush1.bf16.msra.mxu0 %v537
  %1174 = vmatprep.subr.bf16.mxu0 %v534
  %1175 = vmatpush1.bf16.msra.mxu0 %v533
  %1176 = vmatprep.subr.bf16.mxu0 %v530
  %1177 = vmatpush1.bf16.msra.mxu0 %v529
  %1178 = vmatprep.subr.bf16.mxu0 %v526
  %1179 = vmatpush1.bf16.msra.mxu0 %v525
  %1180 = vmatprep.subr.bf16.mxu0 %v522
  %1181 = vmatpush1.bf16.msra.mxu0 %v521
  %1182 = vmatprep.subr.bf16.mxu0 %v518
  %1183 = vmatpush1.bf16.msra.mxu0 %v517
  %1184 = vmatprep.subr.bf16.mxu0 %v514
  %1185 = vmatpush1.bf16.msra.mxu0 %v513
  %1186 = vmatprep.subr.bf16.mxu0 %v510
  %1187 = vmatpush1.bf16.msra.mxu0 %v509
  %1188 = vmatprep.subr.bf16.mxu0 0
  %1189 = vmatpush2.bf16.msra.mxu0 0
  %1190 = vmatprep.subr.bf16.mxu0 0
  %1191 = vmatpush2.bf16.msra.mxu0 0
  %1192 = vmatprep.subr.bf16.mxu0 0
  %1193 = vmatpush2.bf16.msra.mxu0 0
  %1194 = vmatprep.subr.bf16.mxu0 0
  %1195 = vmatpush2.bf16.msra.mxu0 0
  %1196 = vmatprep.subr.bf16.mxu0 0
  %1197 = vmatpush2.bf16.msra.mxu0 0
  %1198 = vmatprep.subr.bf16.mxu0 0
  %1199 = vmatpush2.bf16.msra.mxu0 0
  %1200 = vmatprep.subr.bf16.mxu0 0
  %1201 = vmatpush2.bf16.msra.mxu0 0
  %1202 = vmatprep.subr.bf16.mxu0 0
  %1203 = vmatpush2.bf16.msra.mxu0 0
  %1204 = vmatprep.mubr.bf16.mxu0 0
  %1205 = vmatmul.mubr.bf16.gmra.mxu0 %v1130
  %v1206 = vpop.f32.mrf.mxu0
  %v1207 = vadd.f32 0.0, %v1206
  %v1208 = vpop.f32.mrf.mxu0
  %v1209 = vadd.f32 0.0, %v1208
  %v1210 = vpop.f32.mrf.mxu0
  %v1211 = vpop.f32.mrf.mxu0
  %1212 = vdwg.mxu0
  %v1213 = vadd.f32 %v1126, %v1166
  %v1214 = vadd.f32 %v1127, %v1168
  %v1215 = vadd.f32 %v1128, %v1207
  %v1216 = vadd.f32 %v1129, %v1209
  %v1217 = vmul.f32 %v1213, 0.5
  %v1218 = vtanh.pop %v1217
  %v1219 = vmul.f32 %v1218, 0.5
  %v1220 = vadd.f32 %v1219, 0.5
  %v1221 = vmul.f32 %v1214, 0.5
  %v1222 = vtanh.pop %v1221
  %v1223 = vmul.f32 %v1222, 0.5
  %v1224 = vadd.f32 %v1223, 0.5
  %v1225 = vtanh.pop %v1215
  %v1226 = vmul.f32 %v1216, 0.5
  %v1227 = vtanh.pop %v1226
  %v1228 = vmul.f32 %v1227, 0.5
  %v1229 = vadd.f32 %v1228, 0.5
  %v1230 = vmul.f32 %v1224, %v1120
  %v1231 = vmul.f32 %v1220, %v1225
  %v1232 = vadd.f32 %v1230, %v1231
  %v1233 = vtanh.pop %v1232
  %v1234 = vmul.f32 %v1229, %v1233
  %s1235 = smul.u32 6, 4
  %s1236 = smul.addr %s1235, 8
  %s1237 = scalar_lea.vmem [#allocation3], %s1236
  %v1238 = vld [vmem:[%s1237] sm:$0xff]
  %v1239 = vld [vmem:[%s1237 + $0x8] sm:$0xff]
  %v1240 = vld [vmem:[%s1237 + $0x10] sm:$0xff]
  %v1241 = vld [vmem:[%s1237 + $0x18] sm:$0xff]
  %v1242 = vpack.c.bf16 %v1234, %v1234
  %1243 = vmatprep.subr.bf16.mxu0 %v536
  %1244 = vmatpush1.bf16.msra.mxu0 %v535
  %1245 = vmatprep.subr.bf16.mxu0 %v532
  %1246 = vmatpush1.bf16.msra.mxu0 %v531
  %1247 = vmatprep.subr.bf16.mxu0 %v528
  %1248 = vmatpush1.bf16.msra.mxu0 %v527
  %1249 = vmatprep.subr.bf16.mxu0 %v524
  %1250 = vmatpush1.bf16.msra.mxu0 %v523
  %1251 = vmatprep.subr.bf16.mxu0 %v520
  %1252 = vmatpush1.bf16.msra.mxu0 %v519
  %1253 = vmatprep.subr.bf16.mxu0 %v516
  %1254 = vmatpush1.bf16.msra.mxu0 %v515
  %1255 = vmatprep.subr.bf16.mxu0 %v512
  %1256 = vmatpush1.bf16.msra.mxu0 %v511
  %1257 = vmatprep.subr.bf16.mxu0 %v508
  %1258 = vmatpush1.bf16.msra.mxu0 %v507
  %1259 = vmatprep.subr.bf16.mxu0 0
  %1260 = vmatpush2.bf16.msra.mxu0 0
  %1261 = vmatprep.subr.bf16.mxu0 0
  %1262 = vmatpush2.bf16.msra.mxu0 0
  %1263 = vmatprep.subr.bf16.mxu0 0
  %1264 = vmatpush2.bf16.msra.mxu0 0
  %1265 = vmatprep.subr.bf16.mxu0 0
  %1266 = vmatpush2.bf16.msra.mxu0 0
  %1267 = vmatprep.subr.bf16.mxu0 0
  %1268 = vmatpush2.bf16.msra.mxu0 0
  %1269 = vmatprep.subr.bf16.mxu0 0
  %1270 = vmatpush2.bf16.msra.mxu0 0
  %1271 = vmatprep.subr.bf16.mxu0 0
  %1272 = vmatpush2.bf16.msra.mxu0 0
  %1273 = vmatprep.subr.bf16.mxu0 0
  %1274 = vmatpush2.bf16.msra.mxu0 0
  %1275 = vmatprep.mubr.bf16.mxu0 0
  %1276 = vmatmul.mubr.bf16.gmra.mxu0 %v1242
  %v1277 = vpop.f32.mrf.mxu0
  %v1278 = vadd.f32 0.0, %v1277
  %v1279 = vpop.f32.mrf.mxu0
  %v1280 = vadd.f32 0.0, %v1279
  %v1281 = vpop.f32.mrf.mxu0
  %v1282 = vpop.f32.mrf.mxu0
  %1283 = vdwg.mxu0
  %1284 = vmatprep.subr.bf16.mxu0 %v538
  %1285 = vmatpush1.bf16.msra.mxu0 %v537
  %1286 = vmatprep.subr.bf16.mxu0 %v534
  %1287 = vmatpush1.bf16.msra.mxu0 %v533
  %1288 = vmatprep.subr.bf16.mxu0 %v530
  %1289 = vmatpush1.bf16.msra.mxu0 %v529
  %1290 = vmatprep.subr.bf16.mxu0 %v526
  %1291 = vmatpush1.bf16.msra.mxu0 %v525
  %1292 = vmatprep.subr.bf16.mxu0 %v522
  %1293 = vmatpush1.bf16.msra.mxu0 %v521
  %1294 = vmatprep.subr.bf16.mxu0 %v518
  %1295 = vmatpush1.bf16.msra.mxu0 %v517
  %1296 = vmatprep.subr.bf16.mxu0 %v514
  %1297 = vmatpush1.bf16.msra.mxu0 %v513
  %1298 = vmatprep.subr.bf16.mxu0 %v510
  %1299 = vmatpush1.bf16.msra.mxu0 %v509
  %1300 = vmatprep.subr.bf16.mxu0 0
  %1301 = vmatpush2.bf16.msra.mxu0 0
  %1302 = vmatprep.subr.bf16.mxu0 0
  %1303 = vmatpush2.bf16.msra.mxu0 0
  %1304 = vmatprep.subr.bf16.mxu0 0
  %1305 = vmatpush2.bf16.msra.mxu0 0
  %1306 = vmatprep.subr.bf16.mxu0 0
  %1307 = vmatpush2.bf16.msra.mxu0 0
  %1308 = vmatprep.subr.bf16.mxu0 0
  %1309 = vmatpush2.bf16.msra.mxu0 0
  %1310 = vmatprep.subr.bf16.mxu0 0
  %1311 = vmatpush2.bf16.msra.mxu0 0
  %1312 = vmatprep.subr.bf16.mxu0 0
  %1313 = vmatpush2.bf16.msra.mxu0 0
  %1314 = vmatprep.subr.bf16.mxu0 0
  %1315 = vmatpush2.bf16.msra.mxu0 0
  %1316 = vmatprep.mubr.bf16.mxu0 0
  %1317 = vmatmul.mubr.bf16.gmra.mxu0 %v1242
  %v1318 = vpop.f32.mrf.mxu0
  %v1319 = vadd.f32 0.0, %v1318
  %v1320 = vpop.f32.mrf.mxu0
  %v1321 = vadd.f32 0.0, %v1320
  %v1322 = vpop.f32.mrf.mxu0
  %v1323 = vpop.f32.mrf.mxu0
  %1324 = vdwg.mxu0
  %v1325 = vadd.f32 %v1238, %v1278
  %v1326 = vadd.f32 %v1239, %v1280
  %v1327 = vadd.f32 %v1240, %v1319
  %v1328 = vadd.f32 %v1241, %v1321
  %v1329 = vmul.f32 %v1325, 0.5
  %v1330 = vtanh.pop %v1329
  %v1331 = vmul.f32 %v1330, 0.5
  %v1332 = vadd.f32 %v1331, 0.5
  %v1333 = vmul.f32 %v1326, 0.5
  %v1334 = vtanh.pop %v1333
  %v1335 = vmul.f32 %v1334, 0.5
  %v1336 = vadd.f32 %v1335, 0.5
  %v1337 = vtanh.pop %v1327
  %v1338 = vmul.f32 %v1328, 0.5
  %v1339 = vtanh.pop %v1338
  %v1340 = vmul.f32 %v1339, 0.5
  %v1341 = vadd.f32 %v1340, 0.5
  %v1342 = vmul.f32 %v1336, %v1232
  %v1343 = vmul.f32 %v1332, %v1337
  %v1344 = vadd.f32 %v1342, %v1343
  %v1345 = vtanh.pop %v1344
  %v1346 = vmul.f32 %v1341, %v1345
  %s1347 = smul.u32 7, 4
  %s1348 = smul.addr %s1347, 8
  %s1349 = scalar_lea.vmem [#allocation3], %s1348
  %v1350 = vld [vmem:[%s1349] sm:$0xff]
  %v1351 = vld [vmem:[%s1349 + $0x8] sm:$0xff]
  %v1352 = vld [vmem:[%s1349 + $0x10] sm:$0xff]
  %v1353 = vld [vmem:[%s1349 + $0x18] sm:$0xff]
  %v1354 = vpack.c.bf16 %v1346, %v1346
  %1355 = vmatprep.subr.bf16.mxu0 %v536
  %1356 = vmatpush1.bf16.msra.mxu0 %v535
  %1357 = vmatprep.subr.bf16.mxu0 %v532
  %1358 = vmatpush1.bf16.msra.mxu0 %v531
  %1359 = vmatprep.subr.bf16.mxu0 %v528
  %1360 = vmatpush1.bf16.msra.mxu0 %v527
  %1361 = vmatprep.subr.bf16.mxu0 %v524
  %1362 = vmatpush1.bf16.msra.mxu0 %v523
  %1363 = vmatprep.subr.bf16.mxu0 %v520
  %1364 = vmatpush1.bf16.msra.mxu0 %v519
  %1365 = vmatprep.subr.bf16.mxu0 %v516
  %1366 = vmatpush1.bf16.msra.mxu0 %v515
  %1367 = vmatprep.subr.bf16.mxu0 %v512
  %1368 = vmatpush1.bf16.msra.mxu0 %v511
  %1369 = vmatprep.subr.bf16.mxu0 %v508
  %1370 = vmatpush1.bf16.msra.mxu0 %v507
  %1371 = vmatprep.subr.bf16.mxu0 0
  %1372 = vmatpush2.bf16.msra.mxu0 0
  %1373 = vmatprep.subr.bf16.mxu0 0
  %1374 = vmatpush2.bf16.msra.mxu0 0
  %1375 = vmatprep.subr.bf16.mxu0 0
  %1376 = vmatpush2.bf16.msra.mxu0 0
  %1377 = vmatprep.subr.bf16.mxu0 0
  %1378 = vmatpush2.bf16.msra.mxu0 0
  %1379 = vmatprep.subr.bf16.mxu0 0
  %1380 = vmatpush2.bf16.msra.mxu0 0
  %1381 = vmatprep.subr.bf16.mxu0 0
  %1382 = vmatpush2.bf16.msra.mxu0 0
  %1383 = vmatprep.subr.bf16.mxu0 0
  %1384 = vmatpush2.bf16.msra.mxu0 0
  %1385 = vmatprep.subr.bf16.mxu0 0
  %1386 = vmatpush2.bf16.msra.mxu0 0
  %1387 = vmatprep.mubr.bf16.mxu0 0
  %1388 = vmatmul.mubr.bf16.gmra.mxu0 %v1354
  %v1389 = vpop.f32.mrf.mxu0
  %v1390 = vadd.f32 0.0, %v1389
  %v1391 = vpop.f32.mrf.mxu0
  %v1392 = vadd.f32 0.0, %v1391
  %v1393 = vpop.f32.mrf.mxu0
  %v1394 = vpop.f32.mrf.mxu0
  %1395 = vdwg.mxu0
  %1396 = vmatprep.subr.bf16.mxu0 %v538
  %1397 = vmatpush1.bf16.msra.mxu0 %v537
  %1398 = vmatprep.subr.bf16.mxu0 %v534
  %1399 = vmatpush1.bf16.msra.mxu0 %v533
  %1400 = vmatprep.subr.bf16.mxu0 %v530
  %1401 = vmatpush1.bf16.msra.mxu0 %v529
  %1402 = vmatprep.subr.bf16.mxu0 %v526
  %1403 = vmatpush1.bf16.msra.mxu0 %v525
  %1404 = vmatprep.subr.bf16.mxu0 %v522
  %1405 = vmatpush1.bf16.msra.mxu0 %v521
  %1406 = vmatprep.subr.bf16.mxu0 %v518
  %1407 = vmatpush1.bf16.msra.mxu0 %v517
  %1408 = vmatprep.subr.bf16.mxu0 %v514
  %1409 = vmatpush1.bf16.msra.mxu0 %v513
  %1410 = vmatprep.subr.bf16.mxu0 %v510
  %1411 = vmatpush1.bf16.msra.mxu0 %v509
  %1412 = vmatprep.subr.bf16.mxu0 0
  %1413 = vmatpush2.bf16.msra.mxu0 0
  %1414 = vmatprep.subr.bf16.mxu0 0
  %1415 = vmatpush2.bf16.msra.mxu0 0
  %1416 = vmatprep.subr.bf16.mxu0 0
  %1417 = vmatpush2.bf16.msra.mxu0 0
  %1418 = vmatprep.subr.bf16.mxu0 0
  %1419 = vmatpush2.bf16.msra.mxu0 0
  %1420 = vmatprep.subr.bf16.mxu0 0
  %1421 = vmatpush2.bf16.msra.mxu0 0
  %1422 = vmatprep.subr.bf16.mxu0 0
  %1423 = vmatpush2.bf16.msra.mxu0 0
  %1424 = vmatprep.subr.bf16.mxu0 0
  %1425 = vmatpush2.bf16.msra.mxu0 0
  %1426 = vmatprep.subr.bf16.mxu0 0
  %1427 = vmatpush2.bf16.msra.mxu0 0
  %1428 = vmatprep.mubr.bf16.mxu0 0
  %1429 = vmatmul.mubr.bf16.gmra.mxu0 %v1354
  %v1430 = vpop.f32.mrf.mxu0
  %v1431 = vadd.f32 0.0, %v1430
  %v1432 = vpop.f32.mrf.mxu0
  %v1433 = vadd.f32 0.0, %v1432
  %v1434 = vpop.f32.mrf.mxu0
  %v1435 = vpop.f32.mrf.mxu0
  %1436 = vdwg.mxu0
  %v1437 = vadd.f32 %v1350, %v1390
  %v1438 = vadd.f32 %v1351, %v1392
  %v1439 = vadd.f32 %v1352, %v1431
  %v1440 = vadd.f32 %v1353, %v1433
  %v1441 = vmul.f32 %v1437, 0.5
  %v1442 = vtanh.pop %v1441
  %v1443 = vmul.f32 %v1442, 0.5
  %v1444 = vadd.f32 %v1443, 0.5
  %v1445 = vmul.f32 %v1438, 0.5
  %v1446 = vtanh.pop %v1445
  %v1447 = vmul.f32 %v1446, 0.5
  %v1448 = vadd.f32 %v1447, 0.5
  %v1449 = vtanh.pop %v1439
  %v1450 = vmul.f32 %v1440, 0.5
  %v1451 = vtanh.pop %v1450
  %v1452 = vmul.f32 %v1451, 0.5
  %v1453 = vadd.f32 %v1452, 0.5
  %v1454 = vmul.f32 %v1448, %v1344
  %v1455 = vmul.f32 %v1444, %v1449
  %v1456 = vadd.f32 %v1454, %v1455
  %v1457 = vtanh.pop %v1456
  %v1458 = vmul.f32 %v1453, %v1457
  %1459 = vst [vmem:[%s4] sm:$0xff] %v1458
  %1460 = vst [vmem:[#allocation2] sm:$0xff] %v1456
  // Predicated region
  $region22: #{model_forward.1} parent=0 // pred_check
    _
  $region23: #{model_forward.1} parent=0 // pred_check_branch
    %1462 = sbr.rel (0) target = $region25
  $region24: #{model_forward.1} parent=0 // pred_region
    _
  $region25: #{model_forward.1} parent=0 // pred_fallthru
    _
  // Predicated region
  $region26: #{model_forward.1} parent=0 // pred_check
    _
  $region27: #{model_forward.1} parent=0 // pred_check_branch
    %1464 = sbr.rel (0) target = $region29
  $region28: #{model_forward.1} parent=0 // pred_region
    _
  $region29: #{model_forward.1} parent=0 // pred_fallthru
    _

</llo_original>
